<compile_context>
chip_gen: v5e
topology: v5e:2x2
jax: 0.10.0
libtpu: 0.0.40
codegen_flags: <defaults>
</compile_context>

<pallas_src>
import functools

import numpy as np
import jax
import jax.numpy as jnp
from jax.experimental import pallas as pl
from jax.experimental.pallas import tpu as pltpu


# ---------------------------------------------------------------------------
# Fused decoder-stack kernel
# ---------------------------------------------------------------------------

def decoder_stack_kernel(Bc, L, S, D, F, C, scale, inv_k,
                         x_ref, cross_ref, trend_ref, a_ref, w_ref, b_ref,
                         gamma_ref, beta_ref, wp_ref, bp_ref,
                         out_ref, x_sc, trend_sc):
    """grid = (batch_chunk, layer); x / trend stay resident in VMEM scratch."""
    l = pl.program_id(1)
    f32, bf16 = jnp.float32, jnp.bfloat16

    @pl.when(l == 0)
    def _init():
        x_sc[...] = x_ref[...]          # (Bc, L, D) f32 seasonal component
        trend_sc[...] = trend_ref[...]  # (Bc, L, C) f32 accumulated trend

    x = x_sc[...]                       # (Bc, L, D) f32
    cross = cross_ref[...]              # (Bc, S, D) bf16

    # ---- per-layer packed weights: ONE bf16 slab, static lane slices ----
    wqkv1 = w_ref[0, :, 0:3 * D]                      # (D, 3D) fused self-attn QKV
    wo1   = w_ref[0, :, 3 * D:4 * D]                  # (D, D)
    wq2   = w_ref[0, :, 4 * D:5 * D]                  # (D, D)
    wkv2  = w_ref[0, :, 5 * D:7 * D]                  # (D, 2D) fused cross-attn KV
    wo2   = w_ref[0, :, 7 * D:8 * D]                  # (D, D)
    w1    = w_ref[0, :, 8 * D:8 * D + F]              # (D, F)
    w2t   = w_ref[0, :, 8 * D + F:8 * D + 2 * F]      # (D, F) == W2.T
    wt    = w_ref[0, :, 8 * D + 2 * F:8 * D + 2 * F + C]  # (D, C)
    b1 = b_ref[0, :, 0:F]                             # (1, F) f32
    b2 = b_ref[0, :, F:F + D]                         # (1, D) f32
    bt = b_ref[0, :, F + D:F + D + C]                 # (1, C) f32

    # Moving-average window operator, broadcast once to the chunk batch (hoisted).
    A_b = jnp.broadcast_to(a_ref[...][None], (Bc, L, L))          # bf16 window counts

    def proj(v3, w):                    # (Bc, *, Din) @ (Din, Dout) -> f32
        return jnp.einsum('bld,de->ble', v3.astype(bf16), w,
                          preferred_element_type=f32)

    def softmax_ctx(q, k, v):           # f32 in, f32 out; bf16 MXU feeds
        s = jnp.einsum('bqd,bkd->bqk', q.astype(bf16), k.astype(bf16),
                       preferred_element_type=f32) * scale
        m = jnp.max(s, axis=-1, keepdims=True)
        e = jnp.exp(s - m)
        p = e * pl.reciprocal(jnp.sum(e, axis=-1, keepdims=True))
        return jnp.einsum('bqk,bkd->bqd', p.astype(bf16), v.astype(bf16),
                          preferred_element_type=f32)

    def decomp(v3):                     # series decomposition (per-batch matmul)
        t = jnp.einsum('bql,bld->bqd', A_b, v3.astype(bf16),
                       preferred_element_type=f32) * inv_k
        return v3 - t, t

    # --- self attention + residual, series decomposition 1 ---
    qkv = proj(x, wqkv1)                                           # (Bc, L, 3D)
    ctx = softmax_ctx(qkv[..., 0:D], qkv[..., D:2 * D], qkv[..., 2 * D:3 * D])
    x, t1 = decomp(x + proj(ctx, wo1))

    # --- cross attention + residual, series decomposition 2 ---
    q = proj(x, wq2)                                               # (Bc, L, D)
    kv = proj(cross, wkv2)                                         # (Bc, S, 2D)
    ctx = softmax_ctx(q, kv[..., 0:D], kv[..., D:2 * D])
    x, t2 = decomp(x + proj(ctx, wo2))

    # --- feed forward (kernel_size=1 conv == per-position linear), decomp 3 ---
    y = jnp.maximum(proj(x, w1) + b1, 0.0)                         # (Bc, L, F)
    y = jnp.einsum('blf,df->bld', y.astype(bf16), w2t,
                   preferred_element_type=f32) + b2
    x, t3 = decomp(x + y)

    # --- residual trend projection (D -> C) and accumulation in VMEM ---
    rt = proj(t1 + t2 + t3, wt) + bt
    trend_new = trend_sc[...] + rt
    x_sc[...] = x
    trend_sc[...] = trend_new

    # --- final LayerNorm + projection; single merged HBM write per chunk ---
    @pl.when(l == pl.num_programs(1) - 1)
    def _finalize():
        mean = jnp.mean(x, axis=-1, keepdims=True)
        var = jnp.mean(jnp.square(x - mean), axis=-1, keepdims=True)
        xn = (x - mean) * jax.lax.rsqrt(var + 1e-5)
        xn = xn * gamma_ref[...] + beta_ref[...]
        xp = proj(xn, wp_ref[...]) + bp_ref[...]                   # (Bc, L, C)
        out_ref[0] = xp
        out_ref[1] = trend_new


# ---------------------------------------------------------------------------
# Host wrapper: weight packing, BlockSpecs, single pallas_call
# ---------------------------------------------------------------------------

def moving_avg_counts(L, k):
    """Window-count matrix of Autoformer series_decomp (replicate-pad avg pool).
    Entries are small integers (exact in bf16); the 1/k scale is applied in f32."""
    p = (k - 1) // 2
    A = np.zeros((L, L), np.float32)
    for t in range(L):
        for j in range(t - p, t - p + k):
            A[t, min(max(j, 0), L - 1)] += 1.0
    return A


def decoder_forward(x, cross, trend, layer_params, gamma, beta, wp, bp, *, ma_k):
    """Mirrors Decoder.forward: per-layer (x, residual_trend), trend accumulation,
    then norm and projection — all inside one fused Pallas kernel."""
    B, L, D = x.shape
    S = cross.shape[1]
    C = trend.shape[-1]
    NL = len(layer_params)
    F = layer_params[0]["w1"].shape[1]

    NCHUNK = 2 if B % 2 == 0 else 1      # split batch across TCs on v7x
    Bc = B // NCHUNK
    scale = 1.0 / float(np.sqrt(D))

    # ---- pack the 14 per-layer tensors into ONE bf16 slab + ONE f32 bias slab ----
    def pack_layer(p):
        w = jnp.concatenate([
            p["wq1"], p["wk1"], p["wv1"],        # fused QKV (self)      (D, 3D)
            p["wo1"],                            #                       (D, D)
            p["wq2"],                            #                       (D, D)
            p["wk2"], p["wv2"],                  # fused KV (cross)      (D, 2D)
            p["wo2"],                            #                       (D, D)
            p["w1"],                             #                       (D, F)
            p["w2"].T,                           # stored transposed     (D, F)
            p["wt"],                             #                       (D, C)
        ], axis=1)                               # (D, 8D + 2F + C)
        b = jnp.concatenate([p["b1"], p["b2"], p["bt"]], axis=1)   # (1, F + D + C)
        return w, b

    packed = [pack_layer(p) for p in layer_params]
    w_slab = jnp.stack([w for w, _ in packed]).astype(jnp.bfloat16)   # (NL, D, PW)
    b_slab = jnp.stack([b for _, b in packed]).astype(jnp.float32)    # (NL, 1, PB)
    PW, PB = w_slab.shape[-1], b_slab.shape[-1]

    a_mat = jnp.asarray(moving_avg_counts(L, ma_k), jnp.bfloat16)     # (L, L)

    inputs = (x.astype(jnp.float32),
              cross.astype(jnp.bfloat16),
              trend.astype(jnp.float32),
              a_mat, w_slab, b_slab,
              gamma.astype(jnp.float32), beta.astype(jnp.float32),
              wp.astype(jnp.bfloat16), bp.astype(jnp.float32))

    in_specs = [
        pl.BlockSpec((Bc, L, D), lambda c, l: (c, 0, 0)),     # x          (per chunk)
        pl.BlockSpec((Bc, S, D), lambda c, l: (c, 0, 0)),     # cross      (per chunk)
        pl.BlockSpec((Bc, L, C), lambda c, l: (c, 0, 0)),     # trend      (per chunk)
        pl.BlockSpec((L, L), lambda c, l: (0, 0)),            # avg window (resident)
        pl.BlockSpec((1, D, PW), lambda c, l: (l, 0, 0)),     # weight slab (per layer)
        pl.BlockSpec((1, 1, PB), lambda c, l: (l, 0, 0)),     # bias slab   (per layer)
        pl.BlockSpec((1, D), lambda c, l: (0, 0)),            # gamma
        pl.BlockSpec((1, D), lambda c, l: (0, 0)),            # beta
        pl.BlockSpec((D, C), lambda c, l: (0, 0)),            # wp
        pl.BlockSpec((1, C), lambda c, l: (0, 0)),            # bp
    ]
    out_spec = pl.BlockSpec((2, Bc, L, C), lambda c, l: (0, c, 0, 0))

    # ---- scheduler hint + explicit VMEM budget (headroom, <= 64 MiB for v7x) ----
    flops_layer = 2 * B * (
        L * D * 3 * D + 2 * L * L * D + L * D * D            # self-attn
        + L * D * D + S * D * 2 * D + 2 * L * S * D + L * D * D   # cross-attn
        + 2 * L * D * F                                       # FFN
        + L * D * C                                           # trend projection
        + 3 * L * L * D)                                      # 3 decompositions
    cost = pl.CostEstimate(
        flops=int(NL * flops_layer + 2 * B * L * D * C),
        transcendentals=int(NL * B * (L * L + L * S)),
        bytes_accessed=int(sum(int(np.prod(a.shape)) * a.dtype.itemsize for a in inputs)
                           + 2 * B * L * C * 4))

    def nbytes(shape, dtype):
        return int(np.prod(shape)) * jnp.dtype(dtype).itemsize
    resident = (nbytes((Bc, L, D), jnp.float32) + nbytes((Bc, S, D), jnp.bfloat16)
                + nbytes((Bc, L, C), jnp.float32) + nbytes((L, L), jnp.bfloat16)
                + nbytes((1, D, PW), jnp.bfloat16) + nbytes((1, 1, PB), jnp.float32)
                + 2 * nbytes((1, D), jnp.float32) + nbytes((D, C), jnp.bfloat16)
                + nbytes((1, C), jnp.float32) + nbytes((2, Bc, L, C), jnp.float32))
    scratch = nbytes((Bc, L, D), jnp.float32) + nbytes((Bc, L, C), jnp.float32)
    vmem_limit = int(min(max(6 * (2 * resident + scratch), 32 * 2 ** 20), 64 * 2 ** 20))

    out = pl.pallas_call(
        functools.partial(decoder_stack_kernel, Bc, L, S, D, F, C, scale, 1.0 / ma_k),
        grid=(NCHUNK, NL),
        in_specs=in_specs,
        out_specs=out_spec,
        out_shape=jax.ShapeDtypeStruct((2, B, L, C), jnp.float32),
        scratch_shapes=[pltpu.VMEM((Bc, L, D), jnp.float32),
                        pltpu.VMEM((Bc, L, C), jnp.float32)],
        compiler_params=pltpu.CompilerParams(
            dimension_semantics=("parallel", "arbitrary"),
            vmem_limit_bytes=vmem_limit),
        cost_estimate=cost,
    )(*inputs)

    return out[0], out[1]


# ---------------------------------------------------------------------------
# Deterministic parameter construction
# ---------------------------------------------------------------------------

def init_layer_params(key, D, F, C):
    ks = jax.random.split(key, 13)
    s = 0.1
    return {
        "wq1": jax.random.normal(ks[0], (D, D), jnp.float32) * s,
        "wk1": jax.random.normal(ks[1], (D, D), jnp.float32) * s,
        "wv1": jax.random.normal(ks[2], (D, D), jnp.float32) * s,
        "wo1": jax.random.normal(ks[3], (D, D), jnp.float32) * s,
        "wq2": jax.random.normal(ks[4], (D, D), jnp.float32) * s,
        "wk2": jax.random.normal(ks[5], (D, D), jnp.float32) * s,
        "wv2": jax.random.normal(ks[6], (D, D), jnp.float32) * s,
        "wo2": jax.random.normal(ks[7], (D, D), jnp.float32) * s,
        "w1":  jax.random.normal(ks[8], (D, F), jnp.float32) * s,
        "b1":  jax.random.normal(ks[9], (1, F), jnp.float32) * s,
        "w2":  jax.random.normal(ks[10], (F, D), jnp.float32) * s,
        "b2":  jax.random.normal(ks[11], (1, D), jnp.float32) * s,
        "wt":  jax.random.normal(ks[12], (D, C), jnp.float32) * s,
        "bt":  jnp.zeros((1, C), jnp.float32),
    }


if __name__ == "__main__":
    B, L, S, D, F, C = 2, 8, 16, 32, 64, 4   # batch, dec-seq, enc-seq, d_model, d_ff, c_out
    NUM_LAYERS, MA_K = 2, 5

    key = jax.random.PRNGKey(0)
    k_x, k_cross, k_trend, k_proj, *k_layers = jax.random.split(key, 4 + NUM_LAYERS)

    x = jax.random.normal(k_x, (B, L, D), jnp.float32)
    cross = jax.random.normal(k_cross, (B, S, D), jnp.float32)
    trend = jax.random.normal(k_trend, (B, L, C), jnp.float32) * 0.1

    layer_params = [init_layer_params(k, D, F, C) for k in k_layers]

    kp1, kp2 = jax.random.split(k_proj)
    gamma = jnp.ones((1, D), jnp.float32)
    beta = jnp.zeros((1, D), jnp.float32)
    wp = jax.random.normal(kp1, (D, C), jnp.float32) * 0.1
    bp = jax.random.normal(kp2, (1, C), jnp.float32) * 0.1

    x_out, trend_out = decoder_forward(x, cross, trend, layer_params,
                                       gamma, beta, wp, bp, ma_k=MA_K)
    jax.block_until_ready((x_out, trend_out))

    assert x_out.shape == (B, L, C) and trend_out.shape == (B, L, C)
    assert bool(jnp.all(jnp.isfinite(x_out))) and bool(jnp.all(jnp.isfinite(trend_out)))
    print("KERNEL_OK")
</pallas_src>

<mosaic_0001>
module attributes {stable_mosaic.version = 11 : i64} {
  func.func @decoder_stack_kernel(%arg0: i32, %arg1: i32, %arg2: memref<1x8x32xf32, #tpu.memory_space<vmem>>, %arg3: memref<1x16x32xbf16, #tpu.memory_space<vmem>>, %arg4: memref<1x8x4xf32, #tpu.memory_space<vmem>>, %arg5: memref<8x8xbf16, #tpu.memory_space<vmem>>, %arg6: memref<1x32x388xbf16, #tpu.memory_space<vmem>>, %arg7: memref<1x1x100xf32, #tpu.memory_space<vmem>>, %arg8: memref<1x32xf32, #tpu.memory_space<vmem>>, %arg9: memref<1x32xf32, #tpu.memory_space<vmem>>, %arg10: memref<32x4xbf16, #tpu.memory_space<vmem>>, %arg11: memref<1x4xf32, #tpu.memory_space<vmem>>, %arg12: memref<2x1x8x4xf32, #tpu.memory_space<vmem>>, %arg13: memref<1x8x32xf32, #tpu.memory_space<vmem>>, %arg14: memref<1x8x4xf32, #tpu.memory_space<vmem>>) attributes {dimension_semantics = [#tpu.dimension_semantics<parallel>, #tpu.dimension_semantics<arbitrary>], iteration_bounds = array<i64: 2, 2>, scalar_prefetch = 0 : i64, scratch_operands = 2 : i64, tpu.core_type = #tpu.core_type<tc>, window_params = [{transform_indices = @transform_0, window_bounds = array<i64: 1, 8, 32>}, {transform_indices = @transform_1, window_bounds = array<i64: 1, 16, 32>}, {transform_indices = @transform_2, window_bounds = array<i64: 1, 8, 4>}, {pipeline_mode = #tpu.pipeline_mode<synchronous>, transform_indices = @transform_3, window_bounds = array<i64: 8, 8>}, {transform_indices = @transform_4, window_bounds = array<i64: 1, 32, 388>}, {transform_indices = @transform_5, window_bounds = array<i64: 1, 1, 100>}, {pipeline_mode = #tpu.pipeline_mode<synchronous>, transform_indices = @transform_6, window_bounds = array<i64: 1, 32>}, {pipeline_mode = #tpu.pipeline_mode<synchronous>, transform_indices = @transform_7, window_bounds = array<i64: 1, 32>}, {pipeline_mode = #tpu.pipeline_mode<synchronous>, transform_indices = @transform_8, window_bounds = array<i64: 32, 4>}, {pipeline_mode = #tpu.pipeline_mode<synchronous>, transform_indices = @transform_9, window_bounds = array<i64: 1, 4>}, {transform_indices = @transform_10, window_bounds = array<i64: 2, 1, 8, 4>}]} {
    %c0_i32 = arith.constant 0 : i32
    %0 = arith.cmpi eq, %arg1, %c0_i32 : i32
    %1 = arith.extui %0 : i1 to i32
    %c0_i32_0 = arith.constant 0 : i32
    %2 = arith.cmpi ne, %1, %c0_i32_0 : i32
    scf.if %2 {
      %c0_67 = arith.constant 0 : index
      %c0_68 = arith.constant 0 : index
      %c0_69 = arith.constant 0 : index
      %123 = vector.load %arg2[%c0_67, %c0_68, %c0_69] : memref<1x8x32xf32, #tpu.memory_space<vmem>>, vector<1x8x32xf32>
      %c0_70 = arith.constant 0 : index
      %c0_71 = arith.constant 0 : index
      %c0_72 = arith.constant 0 : index
      %124 = vector.load %arg13[%c0_70, %c0_71, %c0_72] : memref<1x8x32xf32, #tpu.memory_space<vmem>>, vector<1x8x32xf32>
      tpu.vector_store %arg13[%c0_70, %c0_71, %c0_72], %123 {strides = array<i32>} : memref<1x8x32xf32, #tpu.memory_space<vmem>>, vector<1x8x32xf32>,
      %c0_73 = arith.constant 0 : index
      %c0_74 = arith.constant 0 : index
      %c0_75 = arith.constant 0 : index
      %125 = vector.load %arg4[%c0_73, %c0_74, %c0_75] : memref<1x8x4xf32, #tpu.memory_space<vmem>>, vector<1x8x4xf32>
      %c0_76 = arith.constant 0 : index
      %c0_77 = arith.constant 0 : index
      %c0_78 = arith.constant 0 : index
      %126 = vector.load %arg14[%c0_76, %c0_77, %c0_78] : memref<1x8x4xf32, #tpu.memory_space<vmem>>, vector<1x8x4xf32>
      tpu.vector_store %arg14[%c0_76, %c0_77, %c0_78], %125 {strides = array<i32>} : memref<1x8x4xf32, #tpu.memory_space<vmem>>, vector<1x8x4xf32>,
    } else {
    }
    %c0 = arith.constant 0 : index
    %c0_1 = arith.constant 0 : index
    %c0_2 = arith.constant 0 : index
    %3 = vector.load %arg13[%c0, %c0_1, %c0_2] : memref<1x8x32xf32, #tpu.memory_space<vmem>>, vector<1x8x32xf32>
    %c0_3 = arith.constant 0 : index
    %c0_4 = arith.constant 0 : index
    %c0_5 = arith.constant 0 : index
    %4 = vector.load %arg3[%c0_3, %c0_4, %c0_5] : memref<1x16x32xbf16, #tpu.memory_space<vmem>>, vector<1x16x32xbf16>
    %c0_6 = arith.constant 0 : index
    %c0_7 = arith.constant 0 : index
    %c0_8 = arith.constant 0 : index
    %5 = vector.load %arg6[%c0_6, %c0_7, %c0_8] : memref<1x32x388xbf16, #tpu.memory_space<vmem>>, vector<1x32x96xbf16>
    %6 = vector.shape_cast %5 : vector<1x32x96xbf16> to vector<32x96xbf16>
    %c0_9 = arith.constant 0 : index
    %c0_10 = arith.constant 0 : index
    %c96 = arith.constant 96 : index
    %7 = vector.load %arg6[%c0_9, %c0_10, %c96] : memref<1x32x388xbf16, #tpu.memory_space<vmem>>, vector<1x32x32xbf16>
    %8 = vector.shape_cast %7 : vector<1x32x32xbf16> to vector<32x32xbf16>
    %c0_11 = arith.constant 0 : index
    %c0_12 = arith.constant 0 : index
    %c128 = arith.constant 128 : index
    %9 = vector.load %arg6[%c0_11, %c0_12, %c128] : memref<1x32x388xbf16, #tpu.memory_space<vmem>>, vector<1x32x32xbf16>
    %10 = vector.shape_cast %9 : vector<1x32x32xbf16> to vector<32x32xbf16>
    %c0_13 = arith.constant 0 : index
    %c0_14 = arith.constant 0 : index
    %c160 = arith.constant 160 : index
    %11 = vector.load %arg6[%c0_13, %c0_14, %c160] : memref<1x32x388xbf16, #tpu.memory_space<vmem>>, vector<1x32x64xbf16>
    %12 = vector.shape_cast %11 : vector<1x32x64xbf16> to vector<32x64xbf16>
    %c0_15 = arith.constant 0 : index
    %c0_16 = arith.constant 0 : index
    %c224 = arith.constant 224 : index
    %13 = vector.load %arg6[%c0_15, %c0_16, %c224] : memref<1x32x388xbf16, #tpu.memory_space<vmem>>, vector<1x32x32xbf16>
    %14 = vector.shape_cast %13 : vector<1x32x32xbf16> to vector<32x32xbf16>
    %c0_17 = arith.constant 0 : index
    %c0_18 = arith.constant 0 : index
    %c256 = arith.constant 256 : index
    %15 = vector.load %arg6[%c0_17, %c0_18, %c256] : memref<1x32x388xbf16, #tpu.memory_space<vmem>>, vector<1x32x64xbf16>
    %16 = vector.shape_cast %15 : vector<1x32x64xbf16> to vector<32x64xbf16>
    %c0_19 = arith.constant 0 : index
    %c0_20 = arith.constant 0 : index
    %c320 = arith.constant 320 : index
    %17 = vector.load %arg6[%c0_19, %c0_20, %c320] : memref<1x32x388xbf16, #tpu.memory_space<vmem>>, vector<1x32x64xbf16>
    %18 = vector.shape_cast %17 : vector<1x32x64xbf16> to vector<32x64xbf16>
    %c0_21 = arith.constant 0 : index
    %c0_22 = arith.constant 0 : index
    %c384 = arith.constant 384 : index
    %19 = vector.load %arg6[%c0_21, %c0_22, %c384] : memref<1x32x388xbf16, #tpu.memory_space<vmem>>, vector<1x32x4xbf16>
    %20 = vector.shape_cast %19 : vector<1x32x4xbf16> to vector<32x4xbf16>
    %c0_23 = arith.constant 0 : index
    %c0_24 = arith.constant 0 : index
    %c0_25 = arith.constant 0 : index
    %21 = vector.load %arg7[%c0_23, %c0_24, %c0_25] : memref<1x1x100xf32, #tpu.memory_space<vmem>>, vector<1x1x64xf32>
    %22 = vector.shape_cast %21 : vector<1x1x64xf32> to vector<1x64xf32>
    %c0_26 = arith.constant 0 : index
    %c0_27 = arith.constant 0 : index
    %c64 = arith.constant 64 : index
    %23 = vector.load %arg7[%c0_26, %c0_27, %c64] : memref<1x1x100xf32, #tpu.memory_space<vmem>>, vector<1x1x32xf32>
    %24 = vector.shape_cast %23 : vector<1x1x32xf32> to vector<1x32xf32>
    %c0_28 = arith.constant 0 : index
    %c0_29 = arith.constant 0 : index
    %c96_30 = arith.constant 96 : index
    %25 = vector.load %arg7[%c0_28, %c0_29, %c96_30] : memref<1x1x100xf32, #tpu.memory_space<vmem>>, vector<1x1x4xf32>
    %26 = vector.shape_cast %25 : vector<1x1x4xf32> to vector<1x4xf32>
    %c0_31 = arith.constant 0 : index
    %c0_32 = arith.constant 0 : index
    %27 = vector.load %arg5[%c0_31, %c0_32] : memref<8x8xbf16, #tpu.memory_space<vmem>>, vector<8x8xbf16>
    %28 = vector.shape_cast %27 : vector<8x8xbf16> to vector<1x8x8xbf16>
    %29 = arith.truncf %3 : vector<1x8x32xf32> to vector<1x8x32xbf16>
    "tpu.trace_start"() <{level = 10 : i32, message = "bld,de->ble"}> : () -> ()
    %cst = arith.constant dense<0.000000e+00> : vector<1x8x96xf32>
    %30 = tpu.matmul %29, %6, %cst {dimension_numbers = #tpu.dot_dimension_numbers<[2], [0], [0, 1], [1], [0, 0, 0, 1, 1, 1], [], []>} : vector<1x8x32xbf16>, vector<32x96xbf16>, vector<1x8x96xf32> -> vector<1x8x96xf32>
    "tpu.trace_stop"() : () -> ()
    %31 = vector.extract_strided_slice %30 {offsets = [0, 0, 0], sizes = [1, 8, 32], strides = [1, 1, 1]} : vector<1x8x96xf32> to vector<1x8x32xf32>
    %32 = vector.extract_strided_slice %30 {offsets = [0, 0, 32], sizes = [1, 8, 32], strides = [1, 1, 1]} : vector<1x8x96xf32> to vector<1x8x32xf32>
    %33 = vector.extract_strided_slice %30 {offsets = [0, 0, 64], sizes = [1, 8, 32], strides = [1, 1, 1]} : vector<1x8x96xf32> to vector<1x8x32xf32>
    %34 = arith.truncf %31 : vector<1x8x32xf32> to vector<1x8x32xbf16>
    %35 = arith.truncf %32 : vector<1x8x32xf32> to vector<1x8x32xbf16>
    "tpu.trace_start"() <{level = 10 : i32, message = "bqd,bkd->bqk"}> : () -> ()
    %cst_33 = arith.constant dense<0.000000e+00> : vector<1x8x8xf32>
    %36 = tpu.matmul %34, %35, %cst_33 {dimension_numbers = #tpu.dot_dimension_numbers<[2], [2], [1], [1], [0, 0, 0, 1, 1, 1], [0], [0]>} : vector<1x8x32xbf16>, vector<1x8x32xbf16>, vector<1x8x8xf32> -> vector<1x8x8xf32>
    "tpu.trace_stop"() : () -> ()
    %cst_34 = arith.constant 0.176776692 : f32
    %37 = vector.broadcast %cst_34 : f32 to vector<1x8x8xf32>
    %38 = arith.mulf %36, %37 : vector<1x8x8xf32>
    %cst_35 = arith.constant dense<0xFF800000> : vector<1x8xf32>
    %39 = vector.multi_reduction <maximumf>, %38, %cst_35 [2] : vector<1x8x8xf32> to vector<1x8xf32>
    %40 = vector.shape_cast %39 : vector<1x8xf32> to vector<1x8x1xf32>
    %41 = vector.broadcast %40 : vector<1x8x1xf32> to vector<1x8x8xf32>
    %42 = arith.subf %38, %41 : vector<1x8x8xf32>
    %43 = math.exp %42 : vector<1x8x8xf32>
    %cst_36 = arith.constant dense<0.000000e+00> : vector<1x8xf32>
    %44 = vector.multi_reduction <add>, %43, %cst_36 [2] : vector<1x8x8xf32> to vector<1x8xf32>
    %45 = vector.shape_cast %44 : vector<1x8xf32> to vector<1x8x1xf32>
    %46 = tpu.reciprocal %45 : vector<1x8x1xf32> -> vector<1x8x1xf32>
    %47 = vector.broadcast %46 : vector<1x8x1xf32> to vector<1x8x8xf32>
    %48 = arith.mulf %43, %47 : vector<1x8x8xf32>
    %49 = arith.truncf %48 : vector<1x8x8xf32> to vector<1x8x8xbf16>
    %50 = arith.truncf %33 : vector<1x8x32xf32> to vector<1x8x32xbf16>
    "tpu.trace_start"() <{level = 10 : i32, message = "bqk,bkd->bqd"}> : () -> ()
    %cst_37 = arith.constant dense<0.000000e+00> : vector<1x8x32xf32>
    %51 = tpu.matmul %49, %50, %cst_37 {dimension_numbers = #tpu.dot_dimension_numbers<[2], [1], [1], [2], [0, 0, 0, 1, 1, 2], [0], [0]>} : vector<1x8x8xbf16>, vector<1x8x32xbf16>, vector<1x8x32xf32> -> vector<1x8x32xf32>
    "tpu.trace_stop"() : () -> ()
    %52 = arith.truncf %51 : vector<1x8x32xf32> to vector<1x8x32xbf16>
    "tpu.trace_start"() <{level = 10 : i32, message = "bld,de->ble"}> : () -> ()
    %cst_38 = arith.constant dense<0.000000e+00> : vector<1x8x32xf32>
    %53 = tpu.matmul %52, %8, %cst_38 {dimension_numbers = #tpu.dot_dimension_numbers<[2], [0], [0, 1], [1], [0, 0, 0, 1, 1, 1], [], []>} : vector<1x8x32xbf16>, vector<32x32xbf16>, vector<1x8x32xf32> -> vector<1x8x32xf32>
    "tpu.trace_stop"() : () -> ()
    %54 = arith.addf %3, %53 : vector<1x8x32xf32>
    %55 = arith.truncf %54 : vector<1x8x32xf32> to vector<1x8x32xbf16>
    "tpu.trace_start"() <{level = 10 : i32, message = "bql,bld->bqd"}> : () -> ()
    %cst_39 = arith.constant dense<0.000000e+00> : vector<1x8x32xf32>
    %56 = tpu.matmul %28, %55, %cst_39 {dimension_numbers = #tpu.dot_dimension_numbers<[2], [1], [1], [2], [0, 0, 0, 1, 1, 2], [0], [0]>} : vector<1x8x8xbf16>, vector<1x8x32xbf16>, vector<1x8x32xf32> -> vector<1x8x32xf32>
    "tpu.trace_stop"() : () -> ()
    %cst_40 = arith.constant 2.000000e-01 : f32
    %57 = vector.broadcast %cst_40 : f32 to vector<1x8x32xf32>
    %58 = arith.mulf %56, %57 : vector<1x8x32xf32>
    %59 = arith.subf %54, %58 : vector<1x8x32xf32>
    %60 = arith.truncf %59 : vector<1x8x32xf32> to vector<1x8x32xbf16>
    "tpu.trace_start"() <{level = 10 : i32, message = "bld,de->ble"}> : () -> ()
    %cst_41 = arith.constant dense<0.000000e+00> : vector<1x8x32xf32>
    %61 = tpu.matmul %60, %10, %cst_41 {dimension_numbers = #tpu.dot_dimension_numbers<[2], [0], [0, 1], [1], [0, 0, 0, 1, 1, 1], [], []>} : vector<1x8x32xbf16>, vector<32x32xbf16>, vector<1x8x32xf32> -> vector<1x8x32xf32>
    %cst_42 = arith.constant dense<0.000000e+00> : vector<1x16x64xf32>
    %62 = tpu.matmul %4, %12, %cst_42 {dimension_numbers = #tpu.dot_dimension_numbers<[2], [0], [0, 1], [1], [0, 0, 0, 1, 1, 1], [], []>} : vector<1x16x32xbf16>, vector<32x64xbf16>, vector<1x16x64xf32> -> vector<1x16x64xf32>
    "tpu.trace_stop"() : () -> ()
    %63 = vector.extract_strided_slice %62 {offsets = [0, 0, 0], sizes = [1, 16, 32], strides = [1, 1, 1]} : vector<1x16x64xf32> to vector<1x16x32xf32>
    %64 = vector.extract_strided_slice %62 {offsets = [0, 0, 32], sizes = [1, 16, 32], strides = [1, 1, 1]} : vector<1x16x64xf32> to vector<1x16x32xf32>
    %65 = arith.truncf %61 : vector<1x8x32xf32> to vector<1x8x32xbf16>
    %66 = arith.truncf %63 : vector<1x16x32xf32> to vector<1x16x32xbf16>
    "tpu.trace_start"() <{level = 10 : i32, message = "bqd,bkd->bqk"}> : () -> ()
    %cst_43 = arith.constant dense<0.000000e+00> : vector<1x8x16xf32>
    %67 = tpu.matmul %65, %66, %cst_43 {dimension_numbers = #tpu.dot_dimension_numbers<[2], [2], [1], [1], [0, 0, 0, 1, 1, 1], [0], [0]>} : vector<1x8x32xbf16>, vector<1x16x32xbf16>, vector<1x8x16xf32> -> vector<1x8x16xf32>
    "tpu.trace_stop"() : () -> ()
    %cst_44 = arith.constant 0.176776692 : f32
    %68 = vector.broadcast %cst_44 : f32 to vector<1x8x16xf32>
    %69 = arith.mulf %67, %68 : vector<1x8x16xf32>
    %cst_45 = arith.constant dense<0xFF800000> : vector<1x8xf32>
    %70 = vector.multi_reduction <maximumf>, %69, %cst_45 [2] : vector<1x8x16xf32> to vector<1x8xf32>
    %71 = vector.shape_cast %70 : vector<1x8xf32> to vector<1x8x1xf32>
    %72 = vector.broadcast %71 : vector<1x8x1xf32> to vector<1x8x16xf32>
    %73 = arith.subf %69, %72 : vector<1x8x16xf32>
    %74 = math.exp %73 : vector<1x8x16xf32>
    %cst_46 = arith.constant dense<0.000000e+00> : vector<1x8xf32>
    %75 = vector.multi_reduction <add>, %74, %cst_46 [2] : vector<1x8x16xf32> to vector<1x8xf32>
    %76 = vector.shape_cast %75 : vector<1x8xf32> to vector<1x8x1xf32>
    %77 = tpu.reciprocal %76 : vector<1x8x1xf32> -> vector<1x8x1xf32>
    %78 = vector.broadcast %77 : vector<1x8x1xf32> to vector<1x8x16xf32>
    %79 = arith.mulf %74, %78 : vector<1x8x16xf32>
    %80 = arith.truncf %79 : vector<1x8x16xf32> to vector<1x8x16xbf16>
    %81 = arith.truncf %64 : vector<1x16x32xf32> to vector<1x16x32xbf16>
    "tpu.trace_start"() <{level = 10 : i32, message = "bqk,bkd->bqd"}> : () -> ()
    %cst_47 = arith.constant dense<0.000000e+00> : vector<1x8x32xf32>
    %82 = tpu.matmul %80, %81, %cst_47 {dimension_numbers = #tpu.dot_dimension_numbers<[2], [1], [1], [2], [0, 0, 0, 1, 1, 2], [0], [0]>} : vector<1x8x16xbf16>, vector<1x16x32xbf16>, vector<1x8x32xf32> -> vector<1x8x32xf32>
    "tpu.trace_stop"() : () -> ()
    %83 = arith.truncf %82 : vector<1x8x32xf32> to vector<1x8x32xbf16>
    "tpu.trace_start"() <{level = 10 : i32, message = "bld,de->ble"}> : () -> ()
    %cst_48 = arith.constant dense<0.000000e+00> : vector<1x8x32xf32>
    %84 = tpu.matmul %83, %14, %cst_48 {dimension_numbers = #tpu.dot_dimension_numbers<[2], [0], [0, 1], [1], [0, 0, 0, 1, 1, 1], [], []>} : vector<1x8x32xbf16>, vector<32x32xbf16>, vector<1x8x32xf32> -> vector<1x8x32xf32>
    "tpu.trace_stop"() : () -> ()
    %85 = arith.addf %59, %84 : vector<1x8x32xf32>
    %86 = arith.truncf %85 : vector<1x8x32xf32> to vector<1x8x32xbf16>
    "tpu.trace_start"() <{level = 10 : i32, message = "bql,bld->bqd"}> : () -> ()
    %cst_49 = arith.constant dense<0.000000e+00> : vector<1x8x32xf32>
    %87 = tpu.matmul %28, %86, %cst_49 {dimension_numbers = #tpu.dot_dimension_numbers<[2], [1], [1], [2], [0, 0, 0, 1, 1, 2], [0], [0]>} : vector<1x8x8xbf16>, vector<1x8x32xbf16>, vector<1x8x32xf32> -> vector<1x8x32xf32>
    "tpu.trace_stop"() : () -> ()
    %cst_50 = arith.constant 2.000000e-01 : f32
    %88 = vector.broadcast %cst_50 : f32 to vector<1x8x32xf32>
    %89 = arith.mulf %87, %88 : vector<1x8x32xf32>
    %90 = arith.subf %85, %89 : vector<1x8x32xf32>
    %91 = arith.truncf %90 : vector<1x8x32xf32> to vector<1x8x32xbf16>
    "tpu.trace_start"() <{level = 10 : i32, message = "bld,de->ble"}> : () -> ()
    %cst_51 = arith.constant dense<0.000000e+00> : vector<1x8x64xf32>
    %92 = tpu.matmul %91, %16, %cst_51 {dimension_numbers = #tpu.dot_dimension_numbers<[2], [0], [0, 1], [1], [0, 0, 0, 1, 1, 1], [], []>} : vector<1x8x32xbf16>, vector<32x64xbf16>, vector<1x8x64xf32> -> vector<1x8x64xf32>
    "tpu.trace_stop"() : () -> ()
    %93 = vector.shape_cast %22 : vector<1x64xf32> to vector<1x1x64xf32>
    %94 = vector.broadcast %93 : vector<1x1x64xf32> to vector<1x8x64xf32>
    %95 = arith.addf %92, %94 : vector<1x8x64xf32>
    %cst_52 = arith.constant 0.000000e+00 : f32
    %96 = vector.broadcast %cst_52 : f32 to vector<1x8x64xf32>
    %97 = arith.maximumf %95, %96 : vector<1x8x64xf32>
    %98 = arith.truncf %97 : vector<1x8x64xf32> to vector<1x8x64xbf16>
    "tpu.trace_start"() <{level = 10 : i32, message = "blf,df->bld"}> : () -> ()
    %cst_53 = arith.constant dense<0.000000e+00> : vector<1x8x32xf32>
    %99 = tpu.matmul %98, %18, %cst_53 {dimension_numbers = #tpu.dot_dimension_numbers<[2], [1], [0, 1], [0], [0, 0, 0, 1, 1, 0], [], []>} : vector<1x8x64xbf16>, vector<32x64xbf16>, vector<1x8x32xf32> -> vector<1x8x32xf32>
    "tpu.trace_stop"() : () -> ()
    %100 = vector.shape_cast %24 : vector<1x32xf32> to vector<1x1x32xf32>
    %101 = vector.broadcast %100 : vector<1x1x32xf32> to vector<1x8x32xf32>
    %102 = arith.addf %99, %101 : vector<1x8x32xf32>
    %103 = arith.addf %90, %102 : vector<1x8x32xf32>
    %104 = arith.truncf %103 : vector<1x8x32xf32> to vector<1x8x32xbf16>
    "tpu.trace_start"() <{level = 10 : i32, message = "bql,bld->bqd"}> : () -> ()
    %cst_54 = arith.constant dense<0.000000e+00> : vector<1x8x32xf32>
    %105 = tpu.matmul %28, %104, %cst_54 {dimension_numbers = #tpu.dot_dimension_numbers<[2], [1], [1], [2], [0, 0, 0, 1, 1, 2], [0], [0]>} : vector<1x8x8xbf16>, vector<1x8x32xbf16>, vector<1x8x32xf32> -> vector<1x8x32xf32>
    "tpu.trace_stop"() : () -> ()
    %cst_55 = arith.constant 2.000000e-01 : f32
    %106 = vector.broadcast %cst_55 : f32 to vector<1x8x32xf32>
    %107 = arith.mulf %105, %106 : vector<1x8x32xf32>
    %108 = arith.subf %103, %107 : vector<1x8x32xf32>
    %109 = arith.addf %58, %89 : vector<1x8x32xf32>
    %110 = arith.addf %109, %107 : vector<1x8x32xf32>
    %111 = arith.truncf %110 : vector<1x8x32xf32> to vector<1x8x32xbf16>
    "tpu.trace_start"() <{level = 10 : i32, message = "bld,de->ble"}> : () -> ()
    %cst_56 = arith.constant dense<0.000000e+00> : vector<1x8x4xf32>
    %112 = tpu.matmul %111, %20, %cst_56 {dimension_numbers = #tpu.dot_dimension_numbers<[2], [0], [0, 1], [1], [0, 0, 0, 1, 1, 1], [], []>} : vector<1x8x32xbf16>, vector<32x4xbf16>, vector<1x8x4xf32> -> vector<1x8x4xf32>
    "tpu.trace_stop"() : () -> ()
    %113 = vector.shape_cast %26 : vector<1x4xf32> to vector<1x1x4xf32>
    %114 = vector.broadcast %113 : vector<1x1x4xf32> to vector<1x8x4xf32>
    %115 = arith.addf %112, %114 : vector<1x8x4xf32>
    %c0_57 = arith.constant 0 : index
    %c0_58 = arith.constant 0 : index
    %c0_59 = arith.constant 0 : index
    %116 = vector.load %arg14[%c0_57, %c0_58, %c0_59] : memref<1x8x4xf32, #tpu.memory_space<vmem>>, vector<1x8x4xf32>
    %117 = arith.addf %116, %115 : vector<1x8x4xf32>
    %c0_60 = arith.constant 0 : index
    %c0_61 = arith.constant 0 : index
    %c0_62 = arith.constant 0 : index
    %118 = vector.load %arg13[%c0_60, %c0_61, %c0_62] : memref<1x8x32xf32, #tpu.memory_space<vmem>>, vector<1x8x32xf32>
    tpu.vector_store %arg13[%c0_60, %c0_61, %c0_62], %108 {strides = array<i32>} : memref<1x8x32xf32, #tpu.memory_space<vmem>>, vector<1x8x32xf32>,
    %c0_63 = arith.constant 0 : index
    %c0_64 = arith.constant 0 : index
    %c0_65 = arith.constant 0 : index
    %119 = vector.load %arg14[%c0_63, %c0_64, %c0_65] : memref<1x8x4xf32, #tpu.memory_space<vmem>>, vector<1x8x4xf32>
    tpu.vector_store %arg14[%c0_63, %c0_64, %c0_65], %117 {strides = array<i32>} : memref<1x8x4xf32, #tpu.memory_space<vmem>>, vector<1x8x4xf32>,
    %c1_i32 = arith.constant 1 : i32
    %120 = arith.cmpi eq, %arg1, %c1_i32 : i32
    %121 = arith.extui %120 : i1 to i32
    %c0_i32_66 = arith.constant 0 : i32
    %122 = arith.cmpi ne, %121, %c0_i32_66 : i32
    scf.if %122 {
      %cst_67 = arith.constant dense<0.000000e+00> : vector<1x8xf32>
      %123 = vector.multi_reduction <add>, %108, %cst_67 [2] : vector<1x8x32xf32> to vector<1x8xf32>
      %124 = vector.shape_cast %123 : vector<1x8xf32> to vector<1x8x1xf32>
      %cst_68 = arith.constant 3.200000e+01 : f32
      %125 = vector.broadcast %cst_68 : f32 to vector<1x8x1xf32>
      %126 = arith.divf %124, %125 : vector<1x8x1xf32>
      %127 = vector.broadcast %126 : vector<1x8x1xf32> to vector<1x8x32xf32>
      %128 = arith.subf %108, %127 : vector<1x8x32xf32>
      %129 = arith.mulf %128, %128 : vector<1x8x32xf32>
      %cst_69 = arith.constant dense<0.000000e+00> : vector<1x8xf32>
      %130 = vector.multi_reduction <add>, %129, %cst_69 [2] : vector<1x8x32xf32> to vector<1x8xf32>
      %131 = vector.shape_cast %130 : vector<1x8xf32> to vector<1x8x1xf32>
      %cst_70 = arith.constant 3.200000e+01 : f32
      %132 = vector.broadcast %cst_70 : f32 to vector<1x8x1xf32>
      %133 = arith.divf %131, %132 : vector<1x8x1xf32>
      %134 = vector.broadcast %126 : vector<1x8x1xf32> to vector<1x8x32xf32>
      %135 = arith.subf %108, %134 : vector<1x8x32xf32>
      %cst_71 = arith.constant 9.99999974E-6 : f32
      %136 = vector.broadcast %cst_71 : f32 to vector<1x8x1xf32>
      %137 = arith.addf %133, %136 : vector<1x8x1xf32>
      %138 = math.rsqrt %137 : vector<1x8x1xf32>
      %139 = vector.broadcast %138 : vector<1x8x1xf32> to vector<1x8x32xf32>
      %140 = arith.mulf %135, %139 : vector<1x8x32xf32>
      %c0_72 = arith.constant 0 : index
      %c0_73 = arith.constant 0 : index
      %141 = vector.load %arg8[%c0_72, %c0_73] : memref<1x32xf32, #tpu.memory_space<vmem>>, vector<1x32xf32>
      %142 = vector.shape_cast %141 : vector<1x32xf32> to vector<1x1x32xf32>
      %143 = vector.broadcast %142 : vector<1x1x32xf32> to vector<1x8x32xf32>
      %144 = arith.mulf %140, %143 : vector<1x8x32xf32>
      %c0_74 = arith.constant 0 : index
      %c0_75 = arith.constant 0 : index
      %145 = vector.load %arg9[%c0_74, %c0_75] : memref<1x32xf32, #tpu.memory_space<vmem>>, vector<1x32xf32>
      %146 = vector.shape_cast %145 : vector<1x32xf32> to vector<1x1x32xf32>
      %147 = vector.broadcast %146 : vector<1x1x32xf32> to vector<1x8x32xf32>
      %148 = arith.addf %144, %147 : vector<1x8x32xf32>
      %c0_76 = arith.constant 0 : index
      %c0_77 = arith.constant 0 : index
      %149 = vector.load %arg10[%c0_76, %c0_77] : memref<32x4xbf16, #tpu.memory_space<vmem>>, vector<32x4xbf16>
      %150 = arith.truncf %148 : vector<1x8x32xf32> to vector<1x8x32xbf16>
      "tpu.trace_start"() <{level = 10 : i32, message = "bld,de->ble"}> : () -> ()
      %cst_78 = arith.constant dense<0.000000e+00> : vector<1x8x4xf32>
      %151 = tpu.matmul %150, %149, %cst_78 {dimension_numbers = #tpu.dot_dimension_numbers<[2], [0], [0, 1], [1], [0, 0, 0, 1, 1, 1], [], []>} : vector<1x8x32xbf16>, vector<32x4xbf16>, vector<1x8x4xf32> -> vector<1x8x4xf32>
      "tpu.trace_stop"() : () -> ()
      %c0_79 = arith.constant 0 : index
      %c0_80 = arith.constant 0 : index
      %152 = vector.load %arg11[%c0_79, %c0_80] : memref<1x4xf32, #tpu.memory_space<vmem>>, vector<1x4xf32>
      %153 = vector.shape_cast %152 : vector<1x4xf32> to vector<1x1x4xf32>
      %154 = vector.broadcast %153 : vector<1x1x4xf32> to vector<1x8x4xf32>
      %155 = arith.addf %151, %154 : vector<1x8x4xf32>
      %c0_81 = arith.constant 0 : index
      %c0_82 = arith.constant 0 : index
      %c0_83 = arith.constant 0 : index
      %c0_84 = arith.constant 0 : index
      %156 = vector.load %arg12[%c0_81, %c0_82, %c0_83, %c0_84] : memref<2x1x8x4xf32, #tpu.memory_space<vmem>>, vector<1x1x8x4xf32>
      %157 = vector.shape_cast %156 : vector<1x1x8x4xf32> to vector<1x8x4xf32>
      %158 = vector.shape_cast %155 : vector<1x8x4xf32> to vector<1x1x8x4xf32>
      tpu.vector_store %arg12[%c0_81, %c0_82, %c0_83, %c0_84], %158 {strides = array<i32>} : memref<2x1x8x4xf32, #tpu.memory_space<vmem>>, vector<1x1x8x4xf32>,
      %c1 = arith.constant 1 : index
      %c0_85 = arith.constant 0 : index
      %c0_86 = arith.constant 0 : index
      %c0_87 = arith.constant 0 : index
      %159 = vector.load %arg12[%c1, %c0_85, %c0_86, %c0_87] : memref<2x1x8x4xf32, #tpu.memory_space<vmem>>, vector<1x1x8x4xf32>
      %160 = vector.shape_cast %159 : vector<1x1x8x4xf32> to vector<1x8x4xf32>
      %161 = vector.shape_cast %117 : vector<1x8x4xf32> to vector<1x1x8x4xf32>
      tpu.vector_store %arg12[%c1, %c0_85, %c0_86, %c0_87], %161 {strides = array<i32>} : memref<2x1x8x4xf32, #tpu.memory_space<vmem>>, vector<1x1x8x4xf32>,
    } else {
    }
    return
  }
  func.func @transform_0(%arg0: i32, %arg1: i32) -> (i32, i32, i32) {
    %c0_i32 = arith.constant 0 : i32
    %c0_i32_0 = arith.constant 0 : i32
    %c0_i32_1 = arith.constant 0 : i32
    return %arg0, %c0_i32, %c0_i32_0 : i32, i32, i32
  }
  func.func @transform_1(%arg0: i32, %arg1: i32) -> (i32, i32, i32) {
    %c0_i32 = arith.constant 0 : i32
    %c0_i32_0 = arith.constant 0 : i32
    %c0_i32_1 = arith.constant 0 : i32
    return %arg0, %c0_i32, %c0_i32_0 : i32, i32, i32
  }
  func.func @transform_2(%arg0: i32, %arg1: i32) -> (i32, i32, i32) {
    %c0_i32 = arith.constant 0 : i32
    %c0_i32_0 = arith.constant 0 : i32
    %c0_i32_1 = arith.constant 0 : i32
    return %arg0, %c0_i32, %c0_i32_0 : i32, i32, i32
  }
  func.func @transform_3(%arg0: i32, %arg1: i32) -> (i32, i32) {
    %c0_i32 = arith.constant 0 : i32
    %c0_i32_0 = arith.constant 0 : i32
    %c0_i32_1 = arith.constant 0 : i32
    return %c0_i32, %c0_i32_0 : i32, i32
  }
  func.func @transform_4(%arg0: i32, %arg1: i32) -> (i32, i32, i32) {
    %c0_i32 = arith.constant 0 : i32
    %c0_i32_0 = arith.constant 0 : i32
    %c0_i32_1 = arith.constant 0 : i32
    return %arg1, %c0_i32, %c0_i32_0 : i32, i32, i32
  }
  func.func @transform_5(%arg0: i32, %arg1: i32) -> (i32, i32, i32) {
    %c0_i32 = arith.constant 0 : i32
    %c0_i32_0 = arith.constant 0 : i32
    %c0_i32_1 = arith.constant 0 : i32
    return %arg1, %c0_i32, %c0_i32_0 : i32, i32, i32
  }
  func.func @transform_6(%arg0: i32, %arg1: i32) -> (i32, i32) {
    %c0_i32 = arith.constant 0 : i32
    %c0_i32_0 = arith.constant 0 : i32
    %c0_i32_1 = arith.constant 0 : i32
    return %c0_i32, %c0_i32_0 : i32, i32
  }
  func.func @transform_7(%arg0: i32, %arg1: i32) -> (i32, i32) {
    %c0_i32 = arith.constant 0 : i32
    %c0_i32_0 = arith.constant 0 : i32
    %c0_i32_1 = arith.constant 0 : i32
    return %c0_i32, %c0_i32_0 : i32, i32
  }
  func.func @transform_8(%arg0: i32, %arg1: i32) -> (i32, i32) {
    %c0_i32 = arith.constant 0 : i32
    %c0_i32_0 = arith.constant 0 : i32
    %c0_i32_1 = arith.constant 0 : i32
    return %c0_i32, %c0_i32_0 : i32, i32
  }
  func.func @transform_9(%arg0: i32, %arg1: i32) -> (i32, i32) {
    %c0_i32 = arith.constant 0 : i32
    %c0_i32_0 = arith.constant 0 : i32
    %c0_i32_1 = arith.constant 0 : i32
    return %c0_i32, %c0_i32_0 : i32, i32
  }
  func.func @transform_10(%arg0: i32, %arg1: i32) -> (i32, i32, i32, i32) {
    %c0_i32 = arith.constant 0 : i32
    %c0_i32_0 = arith.constant 0 : i32
    %c0_i32_1 = arith.constant 0 : i32
    %c0_i32_2 = arith.constant 0 : i32
    return %c0_i32, %arg0, %c0_i32_0, %c0_i32_1 : i32, i32, i32, i32
  }
}

</mosaic_0001>

<llo_original>
// kernel: tpu_custom_call.1
$region0: #{tpu_custom_call.1}
  #allocation0 [shape = 'u32[]', space=smem, size = 0x4, offset = 0x4, fixed_abs, tag = 'smem constant byte address 0x4 - core index']
  #allocation1 [shape = 'u32[72,128]{1,0:T(1,128)}', space=vmem, size = 0x9000, scoped, tag = 'internal scratch']
  #allocation2 [shape = 'f32[1,8,32]{2,1,0:T(8,128)}', space=vmem, size = 0x1000, scoped, tag = 'scratch operand']
  #allocation3 [shape = 'f32[1,8,4]{2,1,0:T(8,128)}', space=vmem, size = 0x1000, scoped, tag = 'scratch operand']
  %s0 = inlined_call_operand.vmem [shape: f32[2,8,32], index: 0, kind: input, shape index: {}]
  %s1 = inlined_call_operand.vmem [shape: bf16[2,16,32], index: 1, kind: input, shape index: {}]
  %s2 = inlined_call_operand.vmem [shape: f32[2,8,4], index: 2, kind: input, shape index: {}]
  %s3 = inlined_call_operand.vmem [shape: bf16[8,8], index: 3, kind: input, shape index: {}]
  %s4 = inlined_call_operand.hbm [shape: bf16[2,32,388], index: 4, kind: input, shape index: {}]
  %s5 = inlined_call_operand.vmem [shape: f32[2,1,100], index: 5, kind: input, shape index: {}]
  %s6 = inlined_call_operand.vmem [shape: f32[1,32], index: 6, kind: input, shape index: {}]
  %s7 = inlined_call_operand.vmem [shape: f32[1,32], index: 7, kind: input, shape index: {}]
  %s8 = inlined_call_operand.vmem [shape: bf16[32,4], index: 8, kind: input, shape index: {}]
  %s9 = inlined_call_operand.vmem [shape: f32[1,4], index: 9, kind: input, shape index: {}]
  %s10 = inlined_call_operand.vmem [shape: f32[2,2,8,4], index: 10, kind: output, shape index: {}]
  %s11 = sld [smem:[#allocation0]]
  $region119: #{tpu_custom_call.1} parent=0
    _
  %s13 = ssub.s32 1, %s11
  %s14 = scalar_select 0, %s13, %s11
  $region1: #{tpu_custom_call.1} parent=0
    #allocation4 [shape = 'u8[65536]{0}', space=vmem, size = 0x10000, scoped, tag = 'input window, operand 4']
    #allocation5 [shape = 's32[2]{0}', space=sflag, size = 0x8, scoped, tag = 'scoped memory for tpu_custom_call.1']
    #allocation6 [shape = 'u8[16384]{0}', space=vmem, size = 0x4000, scoped, tag = 'output window, operand 0']
    %15 = vsyncpa [#allocation5], 0
    %s16 = scalar_lea.sflag [#allocation5], 1
    %17 = vsyncpa %s16, 0
    loop: start=0, step=1, limit=6
    $region2: #{tpu_custom_call.1} parent=1 // loop_pre_header
      _
    $region3: #{tpu_custom_call.1} parent=1 // loop_header
      %s19 = sphi 0, %s23
      %p20 = scmp.ge.s32.totalorder %s19, 6
      %s26 = sphi 0, %s38
      %s27 = sphi 0, %s34
      %s28 = sphi 0, %s26
      %s29 = sphi 0, %s27
      %s30 = sphi 0, %s28
      %s31 = sphi 0, %s29
      %s41 = sphi 0, %s43
      %s44 = sphi 0, %s41
      %s45 = sphi 0, %s44
      %s61 = sphi 0, %s45
      %s67 = sphi 0, %s69
      %s70 = sphi 0, %s67
      %s71 = sphi 0, %s70
      %s87 = sphi 0, %s71
      %s93 = sphi 0, %s95
      %s96 = sphi 0, %s93
      %s97 = sphi 0, %s96
      %s113 = sphi 0, %s97
      %s117 = sphi 0, %s117
      %s119 = sphi 0, %s117
      %s120 = sphi 0, %s119
      %s134 = sphi 0, %s120
      %s140 = sphi 0, %s142
      %s143 = sphi 0, %s140
      %s144 = sphi 0, %s143
      %s160 = sphi 0, %s144
      %s166 = sphi 0, %s168
      %s169 = sphi 0, %s166
      %s170 = sphi 0, %s169
      %s186 = sphi 0, %s170
      %s190 = sphi 0, %s190
      %s192 = sphi 0, %s190
      %s193 = sphi 0, %s192
      %s207 = sphi 0, %s193
      %s211 = sphi 0, %s211
      %s213 = sphi 0, %s211
      %s214 = sphi 0, %s213
      %s228 = sphi 0, %s214
      %s232 = sphi 0, %s232
      %s234 = sphi 0, %s232
      %s235 = sphi 0, %s234
      %s249 = sphi 0, %s235
      %s253 = sphi 0, %s253
      %s255 = sphi 0, %s253
      %s256 = sphi 0, %s255
      %s270 = sphi 0, %s256
      %s276 = sphi 0, %s278
      %s279 = sphi 0, %s276
      %s280 = sphi 0, %s279
      %s296 = sphi 0, %s280
    $region4: #{tpu_custom_call.1} parent=1 // loop_header_branch
      %22 = sbr.rel (%p20) target = $region8
    $region5: #{tpu_custom_call.1} parent=1 // loop_body
      %s24 = ssub.s32 %s19, 1
      %s25 = ssub.s32 %s19, 2
      %s32 = sadd.s32 1, %s27
      %p33 = scmp.ge.s32.totalorder %s32, 2
      %s34 = scalar_select %p33, 0, %s32
      %s35 = sadd.s32 1, %s26
      %s36 = scalar_select %p33, %s35, %s26
      %p37 = scmp.ge.s32.totalorder %s36, 2
      %s38 = scalar_select %p37, 0, %s36
      %s39 = ssub.s32 %s26, %s38
      %p40 = scmp.eq.s32.totalorder %s39, 0
      %s42 = sadd.s32 %s41, 1
      %s43 = scalar_select %p40, %s41, %s42
      %p46 = pneg %p40
      %p47 = scmp.eq.s32.totalorder %s19, 3
      %p48 = por %p46, %p47
      %p49 = scmp.ne.s32.totalorder %s41, %s44
      %p50 = scmp.eq.s32.totalorder %s19, 0
      %p51 = por %p49, %p50
      %p52 = scmp.ne.s32.totalorder %s41, %s44
      %p53 = scmp.eq.s32.totalorder %s24, 3
      %p54 = por %p52, %p53
      %p55 = scmp.ne.s32.totalorder %s44, %s45
      %p56 = scmp.eq.s32.totalorder %s24, 0
      %p57 = por %p55, %p56
      %p58 = scmp.ne.s32.totalorder %s44, %s45
      %p59 = scmp.eq.s32.totalorder %s25, 3
      %p60 = por %p58, %p59
      %p62 = scmp.ne.s32.totalorder %s45, %s61
      %p63 = scmp.eq.s32.totalorder %s25, 0
      %p64 = por %p62, %p63
      %s65 = ssub.s32 %s26, %s38
      %p66 = scmp.eq.s32.totalorder %s65, 0
      %s68 = sadd.s32 %s67, 1
      %s69 = scalar_select %p66, %s67, %s68
      %p72 = pneg %p66
      %p73 = scmp.eq.s32.totalorder %s19, 3
      %p74 = por %p72, %p73
      %p75 = scmp.ne.s32.totalorder %s67, %s70
      %p76 = scmp.eq.s32.totalorder %s19, 0
      %p77 = por %p75, %p76
      %p78 = scmp.ne.s32.totalorder %s67, %s70
      %p79 = scmp.eq.s32.totalorder %s24, 3
      %p80 = por %p78, %p79
      %p81 = scmp.ne.s32.totalorder %s70, %s71
      %p82 = scmp.eq.s32.totalorder %s24, 0
      %p83 = por %p81, %p82
      %p84 = scmp.ne.s32.totalorder %s70, %s71
      %p85 = scmp.eq.s32.totalorder %s25, 3
      %p86 = por %p84, %p85
      %p88 = scmp.ne.s32.totalorder %s71, %s87
      %p89 = scmp.eq.s32.totalorder %s25, 0
      %p90 = por %p88, %p89
      %s91 = ssub.s32 %s26, %s38
      %p92 = scmp.eq.s32.totalorder %s91, 0
      %s94 = sadd.s32 %s93, 1
      %s95 = scalar_select %p92, %s93, %s94
      %p98 = pneg %p92
      %p99 = scmp.eq.s32.totalorder %s19, 3
      %p100 = por %p98, %p99
      %p101 = scmp.ne.s32.totalorder %s93, %s96
      %p102 = scmp.eq.s32.totalorder %s19, 0
      %p103 = por %p101, %p102
      %p104 = scmp.ne.s32.totalorder %s93, %s96
      %p105 = scmp.eq.s32.totalorder %s24, 3
      %p106 = por %p104, %p105
      %p107 = scmp.ne.s32.totalorder %s96, %s97
      %p108 = scmp.eq.s32.totalorder %s24, 0
      %p109 = por %p107, %p108
      %p110 = scmp.ne.s32.totalorder %s96, %s97
      %p111 = scmp.eq.s32.totalorder %s25, 3
      %p112 = por %p110, %p111
      %p114 = scmp.ne.s32.totalorder %s97, %s113
      %p115 = scmp.eq.s32.totalorder %s25, 0
      %p116 = por %p114, %p115
      %s118 = sadd.s32 %s117, 1
      %p121 = scmp.eq.s32.totalorder %s19, 3
      %p122 = scmp.ne.s32.totalorder %s117, %s119
      %p123 = scmp.eq.s32.totalorder %s19, 0
      %p124 = por %p122, %p123
      %p125 = scmp.ne.s32.totalorder %s117, %s119
      %p126 = scmp.eq.s32.totalorder %s24, 3
      %p127 = por %p125, %p126
      %p128 = scmp.ne.s32.totalorder %s119, %s120
      %p129 = scmp.eq.s32.totalorder %s24, 0
      %p130 = por %p128, %p129
      %p131 = scmp.ne.s32.totalorder %s119, %s120
      %p132 = scmp.eq.s32.totalorder %s25, 3
      %p133 = por %p131, %p132
      %p135 = scmp.ne.s32.totalorder %s120, %s134
      %p136 = scmp.eq.s32.totalorder %s25, 0
      %p137 = por %p135, %p136
      %s138 = ssub.s32 %s27, %s34
      %p139 = scmp.eq.s32.totalorder %s138, 0
      %s141 = sadd.s32 %s140, 1
      %s142 = scalar_select %p139, %s140, %s141
      %p145 = pneg %p139
      %p146 = scmp.eq.s32.totalorder %s19, 3
      %p147 = por %p145, %p146
      %p148 = scmp.ne.s32.totalorder %s140, %s143
      %p149 = scmp.eq.s32.totalorder %s19, 0
      %p150 = por %p148, %p149
      %p151 = scmp.ne.s32.totalorder %s140, %s143
      %p152 = scmp.eq.s32.totalorder %s24, 3
      %p153 = por %p151, %p152
      %p154 = scmp.ne.s32.totalorder %s143, %s144
      %p155 = scmp.eq.s32.totalorder %s24, 0
      %p156 = por %p154, %p155
      %p157 = scmp.ne.s32.totalorder %s143, %s144
      %p158 = scmp.eq.s32.totalorder %s25, 3
      %p159 = por %p157, %p158
      %p161 = scmp.ne.s32.totalorder %s144, %s160
      %p162 = scmp.eq.s32.totalorder %s25, 0
      %p163 = por %p161, %p162
      %s164 = ssub.s32 %s27, %s34
      %p165 = scmp.eq.s32.totalorder %s164, 0
      %s167 = sadd.s32 %s166, 1
      %s168 = scalar_select %p165, %s166, %s167
      %p171 = pneg %p165
      %p172 = scmp.eq.s32.totalorder %s19, 3
      %p173 = por %p171, %p172
      %p174 = scmp.ne.s32.totalorder %s166, %s169
      %p175 = scmp.eq.s32.totalorder %s19, 0
      %p176 = por %p174, %p175
      %p177 = scmp.ne.s32.totalorder %s166, %s169
      %p178 = scmp.eq.s32.totalorder %s24, 3
      %p179 = por %p177, %p178
      %p180 = scmp.ne.s32.totalorder %s169, %s170
      %p181 = scmp.eq.s32.totalorder %s24, 0
      %p182 = por %p180, %p181
      %p183 = scmp.ne.s32.totalorder %s169, %s170
      %p184 = scmp.eq.s32.totalorder %s25, 3
      %p185 = por %p183, %p184
      %p187 = scmp.ne.s32.totalorder %s170, %s186
      %p188 = scmp.eq.s32.totalorder %s25, 0
      %p189 = por %p187, %p188
      %s191 = sadd.s32 %s190, 1
      %p194 = scmp.eq.s32.totalorder %s19, 3
      %p195 = scmp.ne.s32.totalorder %s190, %s192
      %p196 = scmp.eq.s32.totalorder %s19, 0
      %p197 = por %p195, %p196
      %p198 = scmp.ne.s32.totalorder %s190, %s192
      %p199 = scmp.eq.s32.totalorder %s24, 3
      %p200 = por %p198, %p199
      %p201 = scmp.ne.s32.totalorder %s192, %s193
      %p202 = scmp.eq.s32.totalorder %s24, 0
      %p203 = por %p201, %p202
      %p204 = scmp.ne.s32.totalorder %s192, %s193
      %p205 = scmp.eq.s32.totalorder %s25, 3
      %p206 = por %p204, %p205
      %p208 = scmp.ne.s32.totalorder %s193, %s207
      %p209 = scmp.eq.s32.totalorder %s25, 0
      %p210 = por %p208, %p209
      %s212 = sadd.s32 %s211, 1
      %p215 = scmp.eq.s32.totalorder %s19, 3
      %p216 = scmp.ne.s32.totalorder %s211, %s213
      %p217 = scmp.eq.s32.totalorder %s19, 0
      %p218 = por %p216, %p217
      %p219 = scmp.ne.s32.totalorder %s211, %s213
      %p220 = scmp.eq.s32.totalorder %s24, 3
      %p221 = por %p219, %p220
      %p222 = scmp.ne.s32.totalorder %s213, %s214
      %p223 = scmp.eq.s32.totalorder %s24, 0
      %p224 = por %p222, %p223
      %p225 = scmp.ne.s32.totalorder %s213, %s214
      %p226 = scmp.eq.s32.totalorder %s25, 3
      %p227 = por %p225, %p226
      %p229 = scmp.ne.s32.totalorder %s214, %s228
      %p230 = scmp.eq.s32.totalorder %s25, 0
      %p231 = por %p229, %p230
      %s233 = sadd.s32 %s232, 1
      %p236 = scmp.eq.s32.totalorder %s19, 3
      %p237 = scmp.ne.s32.totalorder %s232, %s234
      %p238 = scmp.eq.s32.totalorder %s19, 0
      %p239 = por %p237, %p238
      %p240 = scmp.ne.s32.totalorder %s232, %s234
      %p241 = scmp.eq.s32.totalorder %s24, 3
      %p242 = por %p240, %p241
      %p243 = scmp.ne.s32.totalorder %s234, %s235
      %p244 = scmp.eq.s32.totalorder %s24, 0
      %p245 = por %p243, %p244
      %p246 = scmp.ne.s32.totalorder %s234, %s235
      %p247 = scmp.eq.s32.totalorder %s25, 3
      %p248 = por %p246, %p247
      %p250 = scmp.ne.s32.totalorder %s235, %s249
      %p251 = scmp.eq.s32.totalorder %s25, 0
      %p252 = por %p250, %p251
      %s254 = sadd.s32 %s253, 1
      %p257 = scmp.eq.s32.totalorder %s19, 3
      %p258 = scmp.ne.s32.totalorder %s253, %s255
      %p259 = scmp.eq.s32.totalorder %s19, 0
      %p260 = por %p258, %p259
      %p261 = scmp.ne.s32.totalorder %s253, %s255
      %p262 = scmp.eq.s32.totalorder %s24, 3
      %p263 = por %p261, %p262
      %p264 = scmp.ne.s32.totalorder %s255, %s256
      %p265 = scmp.eq.s32.totalorder %s24, 0
      %p266 = por %p264, %p265
      %p267 = scmp.ne.s32.totalorder %s255, %s256
      %p268 = scmp.eq.s32.totalorder %s25, 3
      %p269 = por %p267, %p268
      %p271 = scmp.ne.s32.totalorder %s256, %s270
      %p272 = scmp.eq.s32.totalorder %s25, 0
      %p273 = por %p271, %p272
      %s274 = ssub.s32 %s26, %s38
      %p275 = scmp.eq.s32.totalorder %s274, 0
      %s277 = sadd.s32 %s276, 1
      %s278 = scalar_select %p275, %s276, %s277
      %p281 = pneg %p275
      %p282 = scmp.eq.s32.totalorder %s19, 3
      %p283 = por %p281, %p282
      %p284 = scmp.ne.s32.totalorder %s276, %s279
      %p285 = scmp.eq.s32.totalorder %s19, 0
      %p286 = por %p284, %p285
      %p287 = scmp.ne.s32.totalorder %s276, %s279
      %p288 = scmp.eq.s32.totalorder %s24, 3
      %p289 = por %p287, %p288
      %p290 = scmp.ne.s32.totalorder %s279, %s280
      %p291 = scmp.eq.s32.totalorder %s24, 0
      %p292 = por %p290, %p291
      %p293 = scmp.ne.s32.totalorder %s279, %s280
      %p294 = scmp.eq.s32.totalorder %s25, 3
      %p295 = por %p293, %p294
      %p297 = scmp.ne.s32.totalorder %s280, %s296
      %p298 = scmp.eq.s32.totalorder %s25, 0
      %p299 = por %p297, %p298
      %p300 = scmp.le.s32.totalorder 1, %s19
      %p301 = scmp.lt.s32.totalorder %s19, 5
      %p302 = pnand %p300, %p301
      %p303 = pneg %p302
      // Predicated region
      $region9: #{tpu_custom_call.1} parent=5 // pred_check
        _
      $region10: #{tpu_custom_call.1} parent=5 // pred_check_branch
        %305 = sbr.rel (%p302) target = $region12
      $region11: #{tpu_custom_call.1} parent=5 // pred_region
        %s306 = ssub.s32 %s19, 1
        // Predicated region
        $region13: #{tpu_custom_call.1} parent=11 // pred_check
          %p307 = pneg %p130
        $region14: #{tpu_custom_call.1} parent=11 // pred_check_branch
          %309 = sbr.rel (%p307) target = $region16
        $region15: #{tpu_custom_call.1} parent=11 // pred_region
          _
        $region16: #{tpu_custom_call.1} parent=11 // pred_fallthru
          _
        // Predicated region
        $region17: #{tpu_custom_call.1} parent=11 // pred_check
          %p310 = pneg %p203
        $region18: #{tpu_custom_call.1} parent=11 // pred_check_branch
          %312 = sbr.rel (%p310) target = $region20
        $region19: #{tpu_custom_call.1} parent=11 // pred_region
          _
        $region20: #{tpu_custom_call.1} parent=11 // pred_fallthru
          _
        // Predicated region
        $region21: #{tpu_custom_call.1} parent=11 // pred_check
          %p313 = pneg %p224
        $region22: #{tpu_custom_call.1} parent=11 // pred_check_branch
          %315 = sbr.rel (%p313) target = $region24
        $region23: #{tpu_custom_call.1} parent=11 // pred_region
          _
        $region24: #{tpu_custom_call.1} parent=11 // pred_fallthru
          _
        // Predicated region
        $region25: #{tpu_custom_call.1} parent=11 // pred_check
          %p316 = pneg %p245
        $region26: #{tpu_custom_call.1} parent=11 // pred_check_branch
          %318 = sbr.rel (%p316) target = $region28
        $region27: #{tpu_custom_call.1} parent=11 // pred_region
          _
        $region28: #{tpu_custom_call.1} parent=11 // pred_fallthru
          _
        // Predicated region
        $region29: #{tpu_custom_call.1} parent=11 // pred_check
          %p319 = pneg %p266
        $region30: #{tpu_custom_call.1} parent=11 // pred_check_branch
          %321 = sbr.rel (%p319) target = $region32
        $region31: #{tpu_custom_call.1} parent=11 // pred_region
          _
        $region32: #{tpu_custom_call.1} parent=11 // pred_fallthru
          _
      $region12: #{tpu_custom_call.1} parent=5 // pred_fallthru
        _
      %p322 = scmp.lt.s32.totalorder %s19, 4
      // Predicated region
      $region33: #{tpu_custom_call.1} parent=5 // pred_check
        %p323 = pneg %p322
      $region34: #{tpu_custom_call.1} parent=5 // pred_check_branch
        %325 = sbr.rel (%p323) target = $region36
      $region35: #{tpu_custom_call.1} parent=5 // pred_region
        // Predicated region
        $region37: #{tpu_custom_call.1} parent=35 // pred_check
          %p326 = pneg %p51
        $region38: #{tpu_custom_call.1} parent=35 // pred_check_branch
          %328 = sbr.rel (%p326) target = $region40
        $region39: #{tpu_custom_call.1} parent=35 // pred_region
          %p329 = scmp.lt.s32.totalorder %s26, 1
          %s330 = scalar_select %p329, %s26, 1
          %s331 = smul.addr %s330, 8
          %s332 = scalar_lea.vmem %s0, %s331
        $region40: #{tpu_custom_call.1} parent=35 // pred_fallthru
          _
        // Predicated region
        $region41: #{tpu_custom_call.1} parent=35 // pred_check
          %p333 = pneg %p77
        $region42: #{tpu_custom_call.1} parent=35 // pred_check_branch
          %335 = sbr.rel (%p333) target = $region44
        $region43: #{tpu_custom_call.1} parent=35 // pred_region
          %p336 = scmp.lt.s32.totalorder %s26, 1
          %s337 = scalar_select %p336, %s26, 1
          %s338 = smul.addr %s337, 2
          %s339 = smul.addr %s338, 4
          %s340 = scalar_lea.vmem %s1, %s339
        $region44: #{tpu_custom_call.1} parent=35 // pred_fallthru
          _
        // Predicated region
        $region45: #{tpu_custom_call.1} parent=35 // pred_check
          %p341 = pneg %p103
        $region46: #{tpu_custom_call.1} parent=35 // pred_check_branch
          %343 = sbr.rel (%p341) target = $region48
        $region47: #{tpu_custom_call.1} parent=35 // pred_region
          %p344 = scmp.lt.s32.totalorder %s26, 1
          %s345 = scalar_select %p344, %s26, 1
          %s346 = smul.addr %s345, 8
          %s347 = scalar_lea.vmem %s2, %s346
        $region48: #{tpu_custom_call.1} parent=35 // pred_fallthru
          _
        // Predicated region
        $region49: #{tpu_custom_call.1} parent=35 // pred_check
          %p348 = pneg %p150
        $region50: #{tpu_custom_call.1} parent=35 // pred_check_branch
          %350 = sbr.rel (%p348) target = $region52
        $region51: #{tpu_custom_call.1} parent=35 // pred_region
          %s351 = sand.u32 %s140, 1
          %s352 = scalar_lea.sflag [#allocation5], %s351
          %s353 = sand.u32 %s140, 1
          %s354 = smul.addr %s353, 64
          %s355 = scalar_lea.vmem [#allocation4], %s354
          %357 = vsyncadd %s352, 0
          %s358 = smul.addr %s27, 16
          %s359 = smul.addr %s358, 4
          %s360 = scalar_lea.hbm %s4, %s359
          %s361 = sshll.u32 %s360, 4
          %s362 = int_to_ptr.hbm [resolvable:$true] %s361
          %s363 = sshll.u32 %s355, 4
          %s364 = int_to_ptr.vmem [resolvable:$true] %s363
          %369 = dma.hbm_to_vmem [thread:$0]  %s362, 1024, %s364, %s352, 256, 256, 16
        $region52: #{tpu_custom_call.1} parent=35 // pred_fallthru
          _
        // Predicated region
        $region53: #{tpu_custom_call.1} parent=35 // pred_check
          %p370 = pneg %p176
        $region54: #{tpu_custom_call.1} parent=35 // pred_check_branch
          %372 = sbr.rel (%p370) target = $region56
        $region55: #{tpu_custom_call.1} parent=35 // pred_region
          %p373 = scmp.lt.s32.totalorder %s27, 1
          %s374 = scalar_select %p373, %s27, 1
          %s375 = scalar_lea.vmem %s5, %s374
        $region56: #{tpu_custom_call.1} parent=35 // pred_fallthru
          _
      $region36: #{tpu_custom_call.1} parent=5 // pred_fallthru
        _
      %p376 = scmp.le.s32.totalorder 1, %s19
      %p377 = scmp.lt.s32.totalorder %s19, 5
      %p378 = pnand %p376, %p377
      %p379 = pneg %p378
      // Predicated region
      $region57: #{tpu_custom_call.1} parent=5 // pred_check
        _
      $region58: #{tpu_custom_call.1} parent=5 // pred_check_branch
        %381 = sbr.rel (%p378) target = $region60
      $region59: #{tpu_custom_call.1} parent=5 // pred_region
        %s382 = ssub.s32 %s19, 1
        %s383 = sand.u32 %s143, 1
        %s384 = scalar_lea.sflag [#allocation5], %s383
        %s385 = sand.u32 %s143, 1
        %s386 = smul.addr %s385, 64
        %s387 = scalar_lea.vmem [#allocation4], %s386
        // Predicated region
        $region61: #{tpu_custom_call.1} parent=59 // pred_check
          %p388 = pneg %p156
        $region62: #{tpu_custom_call.1} parent=59 // pred_check_branch
          %390 = sbr.rel (%p388) target = $region64
        $region63: #{tpu_custom_call.1} parent=59 // pred_region
          %392 = dma.done %s384, 1024
        $region64: #{tpu_custom_call.1} parent=59 // pred_fallthru
          _
        %p393 = scmp.lt.s32.totalorder %s28, 1
        %s394 = scalar_select %p393, %s28, 1
        %s395 = smul.addr %s394, 8
        %s396 = scalar_lea.vmem %s0, %s395
        %p397 = pneg %p57
        %p398 = pneg %p54
        %p399 = scmp.lt.s32.totalorder %s28, 1
        %s400 = scalar_select %p399, %s28, 1
        %s401 = smul.addr %s400, 2
        %s402 = smul.addr %s401, 4
        %s403 = scalar_lea.vmem %s1, %s402
        %p404 = pneg %p83
        %p405 = pneg %p80
        %p406 = scmp.lt.s32.totalorder %s28, 1
        %s407 = scalar_select %p406, %s28, 1
        %s408 = smul.addr %s407, 8
        %s409 = scalar_lea.vmem %s2, %s408
        %p410 = pneg %p109
        %p411 = pneg %p106
        %p412 = pneg %p130
        %p413 = pneg %p127
        %s414 = sand.u32 %s143, 1
        %s415 = scalar_lea.sflag [#allocation5], %s414
        %s416 = sand.u32 %s143, 1
        %s417 = smul.addr %s416, 64
        %s418 = scalar_lea.vmem [#allocation4], %s417
        %p419 = pneg %p156
        %p420 = pneg %p153
        %p421 = scmp.lt.s32.totalorder %s29, 1
        %s422 = scalar_select %p421, %s29, 1
        %s423 = scalar_lea.vmem %s5, %s422
        %p424 = pneg %p182
        %p425 = pneg %p179
        %p426 = pneg %p203
        %p427 = pneg %p200
        %p428 = pneg %p224
        %p429 = pneg %p221
        %p430 = pneg %p245
        %p431 = pneg %p242
        %p432 = pneg %p266
        %p433 = pneg %p263
        %p434 = pneg %p292
        %p435 = pneg %p289
        %s436 = sand.u32 %s279, 1
        %s437 = sand.u32 %s279, 1
        %s438 = smul.addr %s437, 16
        %s439 = scalar_lea.vmem [#allocation6], %s438
        %p440 = scmp.lt.s32.totalorder %s28, 1
        %s441 = scalar_select %p440, %s28, 1
        %s442 = smul.addr %s441, 8
        %s443 = scalar_lea.vmem %s0, %s442
        %p444 = scmp.lt.s32.totalorder %s28, 1
        %s445 = scalar_select %p444, %s28, 1
        %s446 = smul.addr %s445, 2
        %s447 = smul.addr %s446, 4
        %s448 = scalar_lea.vmem %s1, %s447
        %p449 = scmp.lt.s32.totalorder %s28, 1
        %s450 = scalar_select %p449, %s28, 1
        %s451 = smul.addr %s450, 8
        %s452 = scalar_lea.vmem %s2, %s451
        %p453 = scmp.lt.s32.totalorder %s29, 1
        %s454 = scalar_select %p453, %s29, 1
        %s455 = scalar_lea.vmem %s5, %s454
        %p457 = scmp.eq.s32.totalorder %s29, 0
        // Predicated region
        $region65: #{tpu_custom_call.1} parent=59 // pred_check
          %p458 = pneg %p457
        $region66: #{tpu_custom_call.1} parent=59 // pred_check_branch
          %460 = sbr.rel (%p458) target = $region68
        $region67: #{tpu_custom_call.1} parent=59 // pred_region
          %v461 = vld [vmem:[%s443] sm:$0xff]
          %vm462 = vcmask 261120
          %463 = vst.msk [vmem:[#allocation2] sm:$0xff] %vm462, %v461
          %v464 = vld [vmem:[%s452] sm:$0xff]
          %vm465 = vcmask 31744
          %466 = vst.msk [vmem:[#allocation3] sm:$0xff] %vm465, %v464
        $region68: #{tpu_custom_call.1} parent=59 // pred_fallthru
          _
        %v467 = vld [vmem:[#allocation2] sm:$0xff]
        %v468 = vld [vmem:[%s448] sm:$0xf]
        %v469 = vld [vmem:[%s448 + $0x4] sm:$0xf]
        %v470 = vld [vmem:[%s387] sm:$0xf]
        %v471 = vld [vmem:[%s387 + $0x10] sm:$0xf]
        %v472 = vld [vmem:[%s387 + $0x20] sm:$0xf]
        %v473 = vld [vmem:[%s387 + $0x30] sm:$0xf]
        %v474 = vld [vmem:[%s387 + $0x4] sm:$0xf]
        %v475 = vld [vmem:[%s387 + $0x14] sm:$0xf]
        %v476 = vld [vmem:[%s387 + $0x24] sm:$0xf]
        %v477 = vld [vmem:[%s387 + $0x34] sm:$0xf]
        %v478 = vld [vmem:[%s387 + $0x8] sm:$0xf]
        %v479 = vld [vmem:[%s387 + $0x18] sm:$0xf]
        %v480 = vld [vmem:[%s387 + $0x28] sm:$0xf]
        %v481 = vld [vmem:[%s387 + $0x38] sm:$0xf]
        %v482 = vld [vmem:[%s387 + $0xc] sm:$0xf]
        %v483 = vld [vmem:[%s387 + $0x1c] sm:$0xf]
        %v484 = vld [vmem:[%s387 + $0x2c] sm:$0xf]
        %v485 = vld [vmem:[%s387 + $0x3c] sm:$0xf]
        %v486 = vld [vmem:[%s455] sm:$0x1]
        %v487 = vld [vmem:[%s3] sm:$0xf]
        %v488 = vpack.c.bf16 %v467, %v467
        %v493 = vunpack.c.l.b16 %v470
        %v494 = vunpack.c.l.b16 %v471
        %v495 = vunpack.c.l.b16 %v472
        %v496 = vunpack.c.l.b16 %v473
        %v497 = vpack.c.b16 %v494, %v493
        %v498 = vpack.c.b16 %v496, %v495
        %vm501 = vcmask 261120
        %v503 = vsel %vm501, %v488, 0
        %505 = vmatpush.bf16.msra.mxu0 0
        %506 = vmatpush.bf16.msra.mxu0 0
        %507 = vmatpush.bf16.msra.mxu0 0
        %508 = vmatpush.bf16.msra.mxu0 0
        %509 = vmatpush.bf16.msra.mxu0 0
        %510 = vmatpush.bf16.msra.mxu0 0
        %511 = vmatpush.bf16.msra.mxu0 %v498
        %512 = vmatpush.bf16.msra.mxu0 %v497
        %513 = vmatmul.bf16.gmra.mxu0 %v503
        %v514 = vpop.f32.mrf.mxu0
        %v515 = vadd.f32 0.0, %v514
        %v516 = vpop.f32.mrf.mxu0
        %517 = vdwg.mxu0
        %v518 = vpack.c.bf16 %v515, %v515
        %v520 = vunpack.c.l.b16 %v518
        %v521 = vpack.c.b16 %v520, %v520
        %522 = vrot.lane.b32.xlu0 %v521, 96
        %v523 = vpop.permute.xlu0 %522
        %v525 = vsel %vm501, %v518, 0
        %v528 = vsel %vm501, %v523, 0
        %530 = vmatpush.bf16.xpose.msra.mxu0 0
        %531 = vmatpush.bf16.xpose.msra.mxu0 0
        %532 = vmatpush.bf16.xpose.msra.mxu0 0
        %533 = vmatpush.bf16.xpose.msra.mxu0 0
        %534 = vmatpush.bf16.xpose.msra.mxu0 0
        %535 = vmatpush.bf16.xpose.msra.mxu0 0
        %536 = vmatpush.bf16.xpose.msra.mxu0 0
        %537 = vmatpush.bf16.xpose.msra.mxu0 %v528
        %538 = vmatmul.bf16.gmra.mxu0 %v525
        %v539 = vpop.f32.mrf.mxu0
        %v540 = vadd.f32 0.0, %v539
        %v541 = vpop.f32.mrf.mxu0
        %542 = vdwg.mxu0
        %v543 = vmul.f32 %v540, 0.17677669
        %vm544 = vcmask 64512
        %v545 = vsel %vm544, %v543, -inf
        %546 = vmax.xlane.f32.xlu0 %v545
        %v547 = vpop.xlane.xlu0 %546
        %v548 = vsub.f32 %v543, %v547
        %v549 = vmul.f32 %v548, 1.442695
        %v550 = vpow.pop %v549
        %v551 = vsel %vm544, %v550, 0.0
        %552 = vadd.xlane.f32.xlu0 %v551
        %v553 = vpop.xlane.xlu0 %552
        %v554 = vrcp.pop %v553
        %v555 = vmul.f32 %v553, %v554
        %v556 = vsub.f32 1.0, %v555
        %v557 = vmul.f32 %v554, %v556
        %v558 = vadd.f32 %v554, %v557
        %vm559 = vweird.f32 %v553
        %vm560 = vweird.f32 %v554
        %vm561 = vmor %vm559, %vm560
        %v562 = vsel %vm561, %v554, %v558
        %v563 = vand.u32 2147483647, %v553
        %vm564 = vcmp.eq.f32.partialorder %v563, 8.507059e+37
        %v565 = vand.u32 %v553, 2147483648
        %v566 = vor.u32 1.1754944e-38, %v565
        %v567 = vsel %vm564, %v566, %v562
        %v568 = vmul.f32 %v550, %v567
        %v569 = vpack.c.bf16 %v568, %v568
        %570 = vrot.lane.b32.xlu0 %v521, 64
        %v571 = vpop.permute.xlu0 %570
        %v573 = vsel %vm544, %v569, 0
        %vm575 = vcmask 1043456
        %v577 = vsel %vm575, %v571, 0
        %579 = vmatpush.bf16.msra.mxu0 0
        %580 = vmatpush.bf16.msra.mxu0 0
        %581 = vmatpush.bf16.msra.mxu0 0
        %582 = vmatpush.bf16.msra.mxu0 0
        %583 = vmatpush.bf16.msra.mxu0 0
        %584 = vmatpush.bf16.msra.mxu0 0
        %585 = vmatpush.bf16.msra.mxu0 0
        %586 = vmatpush.bf16.msra.mxu0 %v577
        %587 = vmatmul.bf16.gmra.mxu0 %v573
        %v588 = vpop.f32.mrf.mxu0
        %v589 = vadd.f32 0.0, %v588
        %v590 = vpop.f32.mrf.mxu0
        %591 = vdwg.mxu0
        %v592 = vpack.c.bf16 %v589, %v589
        %593 = vrot.lane.b32.xlu0 %v497, 32
        %v594 = vpop.permute.xlu0 %593
        %595 = vrot.lane.b32.xlu0 %v498, 32
        %v596 = vpop.permute.xlu0 %595
        %v600 = vsel %vm501, %v592, 0
        %602 = vmatpush.bf16.msra.mxu0 0
        %603 = vmatpush.bf16.msra.mxu0 0
        %604 = vmatpush.bf16.msra.mxu0 0
        %605 = vmatpush.bf16.msra.mxu0 0
        %606 = vmatpush.bf16.msra.mxu0 0
        %607 = vmatpush.bf16.msra.mxu0 0
        %608 = vmatpush.bf16.msra.mxu0 %v596
        %609 = vmatpush.bf16.msra.mxu0 %v594
        %610 = vmatmul.bf16.gmra.mxu0 %v600
        %v611 = vpop.f32.mrf.mxu0
        %v612 = vadd.f32 0.0, %v611
        %v613 = vpop.f32.mrf.mxu0
        %614 = vdwg.mxu0
        %v615 = vadd.f32 %v467, %v612
        %v616 = vpack.c.bf16 %v615, %v615
        %v618 = vsel %vm544, %v487, 0
        %v621 = vsel %vm575, %v616, 0
        %623 = vmatpush.bf16.msra.mxu0 0
        %624 = vmatpush.bf16.msra.mxu0 0
        %625 = vmatpush.bf16.msra.mxu0 0
        %626 = vmatpush.bf16.msra.mxu0 0
        %627 = vmatpush.bf16.msra.mxu0 0
        %628 = vmatpush.bf16.msra.mxu0 0
        %629 = vmatpush.bf16.msra.mxu0 0
        %630 = vmatpush.bf16.msra.mxu0 %v621
        %631 = vmatmul.bf16.gmra.mxu0 %v618
        %v632 = vpop.f32.mrf.mxu0
        %v633 = vadd.f32 0.0, %v632
        %v634 = vpop.f32.mrf.mxu0
        %635 = vdwg.mxu0
        %v636 = vmul.f32 %v633, 0.2
        %v637 = vsub.f32 %v615, %v636
        %v638 = vpack.c.bf16 %v637, %v637
        %v643 = vunpack.c.l.b16 %v474
        %v644 = vunpack.c.l.b16 %v475
        %v645 = vunpack.c.l.b16 %v476
        %v646 = vunpack.c.l.b16 %v477
        %v647 = vpack.c.b16 %v644, %v643
        %v648 = vpack.c.b16 %v646, %v645
        %v652 = vsel %vm501, %v638, 0
        %654 = vmatpush.bf16.msra.mxu0 0
        %655 = vmatpush.bf16.msra.mxu0 0
        %656 = vmatpush.bf16.msra.mxu0 0
        %657 = vmatpush.bf16.msra.mxu0 0
        %658 = vmatpush.bf16.msra.mxu0 0
        %659 = vmatpush.bf16.msra.mxu0 0
        %660 = vmatpush.bf16.msra.mxu0 %v648
        %661 = vmatpush.bf16.msra.mxu0 %v647
        %662 = vmatmul.bf16.gmra.mxu0 %v652
        %v663 = vpop.f32.mrf.mxu0
        %v664 = vadd.f32 0.0, %v663
        %v665 = vpop.f32.mrf.mxu0
        %666 = vdwg.mxu0
        %v669 = vunpack.c.l.b16 %v468
        %v670 = vunpack.c.l.b16 %v469
        %v671 = vpack.c.b16 %v670, %v669
        %672 = vrot.lane.b32.xlu0 %v647, 96
        %v673 = vpop.permute.xlu0 %672
        %674 = vrot.lane.b32.xlu0 %v648, 96
        %v675 = vpop.permute.xlu0 %674
        %v679 = vsel %vm501, %v671, 0
        %681 = vmatpush.bf16.msra.mxu0 0
        %682 = vmatpush.bf16.msra.mxu0 0
        %683 = vmatpush.bf16.msra.mxu0 0
        %684 = vmatpush.bf16.msra.mxu0 0
        %685 = vmatpush.bf16.msra.mxu0 0
        %686 = vmatpush.bf16.msra.mxu0 0
        %687 = vmatpush.bf16.msra.mxu0 %v675
        %688 = vmatpush.bf16.msra.mxu0 %v673
        %689 = vmatmul.bf16.gmra.mxu0 %v679
        %v690 = vpop.f32.mrf.mxu0
        %v691 = vadd.f32 0.0, %v690
        %v692 = vpop.f32.mrf.mxu0
        %v693 = vadd.f32 0.0, %v692
        %694 = vdwg.mxu0
        %v695 = vpack.c.bf16 %v664, %v664
        %v696 = vpack.c.bf16 %v691, %v691
        %v697 = vpack.c.bf16 %v693, %v693
        %v700 = vunpack.c.l.b16 %v696
        %v701 = vunpack.c.l.b16 %v697
        %v702 = vpack.c.b16 %v701, %v700
        %v704 = vsel %vm501, %v695, 0
        %v707 = vsel %vm501, %v702, 0
        %709 = vmatpush.bf16.xpose.msra.mxu0 0
        %710 = vmatpush.bf16.xpose.msra.mxu0 0
        %711 = vmatpush.bf16.xpose.msra.mxu0 0
        %712 = vmatpush.bf16.xpose.msra.mxu0 0
        %713 = vmatpush.bf16.xpose.msra.mxu0 0
        %714 = vmatpush.bf16.xpose.msra.mxu0 0
        %715 = vmatpush.bf16.xpose.msra.mxu0 0
        %716 = vmatpush.bf16.xpose.msra.mxu0 %v707
        %717 = vmatmul.bf16.gmra.mxu0 %v704
        %v718 = vpop.f32.mrf.mxu0
        %v719 = vadd.f32 0.0, %v718
        %v720 = vpop.f32.mrf.mxu0
        %721 = vdwg.mxu0
        %v722 = vmul.f32 %v719, 0.17677669
        %vm723 = vcmask 130048
        %v724 = vsel %vm723, %v722, -inf
        %725 = vmax.xlane.f32.xlu0 %v724
        %v726 = vpop.xlane.xlu0 %725
        %v727 = vsub.f32 %v722, %v726
        %v728 = vmul.f32 %v727, 1.442695
        %v729 = vpow.pop %v728
        %v730 = vsel %vm723, %v729, 0.0
        %731 = vadd.xlane.f32.xlu0 %v730
        %v732 = vpop.xlane.xlu0 %731
        %v733 = vrcp.pop %v732
        %v734 = vmul.f32 %v732, %v733
        %v735 = vsub.f32 1.0, %v734
        %v736 = vmul.f32 %v733, %v735
        %v737 = vadd.f32 %v733, %v736
        %vm738 = vweird.f32 %v732
        %vm739 = vweird.f32 %v733
        %vm740 = vmor %vm738, %vm739
        %v741 = vsel %vm740, %v733, %v737
        %v742 = vand.u32 2147483647, %v732
        %vm743 = vcmp.eq.f32.partialorder %v742, 8.507059e+37
        %v744 = vand.u32 %v732, 2147483648
        %v745 = vor.u32 1.1754944e-38, %v744
        %v746 = vsel %vm743, %v745, %v741
        %v747 = vmul.f32 %v729, %v746
        %v748 = vpack.c.bf16 %v747, %v747
        %749 = vrot.lane.b32.xlu0 %v702, 96
        %v750 = vpop.permute.xlu0 %749
        %v753 = vsel %vm723, %v748, 0
        %755 = vmatpush.bf16.msra.mxu0 0
        %756 = vmatpush.bf16.msra.mxu0 0
        %757 = vmatpush.bf16.msra.mxu0 0
        %758 = vmatpush.bf16.msra.mxu0 0
        %759 = vmatpush.bf16.msra.mxu0 0
        %760 = vmatpush.bf16.msra.mxu0 0
        %761 = vmatpush.bf16.msra.mxu0 0
        %762 = vmatpush.bf16.msra.mxu0 %v750
        %763 = vmatmul.bf16.gmra.mxu0 %v753
        %v764 = vpop.f32.mrf.mxu0
        %v765 = vadd.f32 0.0, %v764
        %v766 = vpop.f32.mrf.mxu0
        %767 = vdwg.mxu0
        %v768 = vpack.c.bf16 %v765, %v765
        %769 = vrot.lane.b32.xlu0 %v647, 32
        %v770 = vpop.permute.xlu0 %769
        %771 = vrot.lane.b32.xlu0 %v648, 32
        %v772 = vpop.permute.xlu0 %771
        %v776 = vsel %vm501, %v768, 0
        %778 = vmatpush.bf16.msra.mxu0 0
        %779 = vmatpush.bf16.msra.mxu0 0
        %780 = vmatpush.bf16.msra.mxu0 0
        %781 = vmatpush.bf16.msra.mxu0 0
        %782 = vmatpush.bf16.msra.mxu0 0
        %783 = vmatpush.bf16.msra.mxu0 0
        %784 = vmatpush.bf16.msra.mxu0 %v772
        %785 = vmatpush.bf16.msra.mxu0 %v770
        %786 = vmatmul.bf16.gmra.mxu0 %v776
        %v787 = vpop.f32.mrf.mxu0
        %v788 = vadd.f32 0.0, %v787
        %v789 = vpop.f32.mrf.mxu0
        %790 = vdwg.mxu0
        %v791 = vadd.f32 %v637, %v788
        %v792 = vpack.c.bf16 %v791, %v791
        %v794 = vsel %vm575, %v792, 0
        %796 = vmatpush.bf16.msra.mxu0 0
        %797 = vmatpush.bf16.msra.mxu0 0
        %798 = vmatpush.bf16.msra.mxu0 0
        %799 = vmatpush.bf16.msra.mxu0 0
        %800 = vmatpush.bf16.msra.mxu0 0
        %801 = vmatpush.bf16.msra.mxu0 0
        %802 = vmatpush.bf16.msra.mxu0 0
        %803 = vmatpush.bf16.msra.mxu0 %v794
        %804 = vmatmul.bf16.gmra.mxu0 %v618
        %v805 = vpop.f32.mrf.mxu0
        %v806 = vadd.f32 0.0, %v805
        %v807 = vpop.f32.mrf.mxu0
        %808 = vdwg.mxu0
        %v809 = vmul.f32 %v806, 0.2
        %v810 = vsub.f32 %v791, %v809
        %v811 = vpack.c.bf16 %v810, %v810
        %v813 = vperm.slane %v486, 0
        %v819 = vunpack.c.l.b16 %v478
        %v820 = vunpack.c.l.b16 %v479
        %v821 = vunpack.c.l.b16 %v480
        %v822 = vunpack.c.l.b16 %v481
        %v823 = vpack.c.b16 %v820, %v819
        %v824 = vpack.c.b16 %v822, %v821
        %v828 = vsel %vm501, %v811, 0
        %830 = vmatpush.bf16.msra.mxu0 0
        %831 = vmatpush.bf16.msra.mxu0 0
        %832 = vmatpush.bf16.msra.mxu0 0
        %833 = vmatpush.bf16.msra.mxu0 0
        %834 = vmatpush.bf16.msra.mxu0 0
        %835 = vmatpush.bf16.msra.mxu0 0
        %836 = vmatpush.bf16.msra.mxu0 %v824
        %837 = vmatpush.bf16.msra.mxu0 %v823
        %838 = vmatmul.bf16.gmra.mxu0 %v828
        %v839 = vpop.f32.mrf.mxu0
        %v840 = vadd.f32 %v813, %v839
        %v841 = vpop.f32.mrf.mxu0
        %842 = vdwg.mxu0
        %v843 = vmax.f32 %v840, 0.0
        %v844 = vpack.c.bf16 %v843, %v843
        %845 = vrot.lane.b32.xlu0 %v823, 64
        %v846 = vpop.permute.xlu0 %845
        %847 = vrot.lane.b32.xlu0 %v824, 64
        %v848 = vpop.permute.xlu0 %847
        %849 = vrot.lane.b32.xlu0 %v813, 64
        %v850 = vpop.permute.xlu0 %849
        %vm852 = vcmask 523264
        %v854 = vsel %vm852, %v844, 0
        %v857 = vsel %vm852, %v846, 0
        %v860 = vsel %vm852, %v848, 0
        %862 = vmatpush.bf16.xpose.msra.mxu0 0
        %863 = vmatpush.bf16.xpose.msra.mxu0 0
        %864 = vmatpush.bf16.xpose.msra.mxu0 0
        %865 = vmatpush.bf16.xpose.msra.mxu0 0
        %866 = vmatpush.bf16.xpose.msra.mxu0 0
        %867 = vmatpush.bf16.xpose.msra.mxu0 0
        %868 = vmatpush.bf16.xpose.msra.mxu0 %v860
        %869 = vmatpush.bf16.xpose.msra.mxu0 %v857
        %870 = vmatmul.bf16.gmra.mxu0 %v854
        %v871 = vpop.f32.mrf.mxu0
        %v872 = vadd.f32 %v850, %v871
        %v873 = vpop.f32.mrf.mxu0
        %874 = vdwg.mxu0
        %v875 = vadd.f32 %v810, %v872
        %v876 = vpack.c.bf16 %v875, %v875
        %v878 = vsel %vm575, %v876, 0
        %880 = vmatpush.bf16.msra.mxu0 0
        %881 = vmatpush.bf16.msra.mxu0 0
        %882 = vmatpush.bf16.msra.mxu0 0
        %883 = vmatpush.bf16.msra.mxu0 0
        %884 = vmatpush.bf16.msra.mxu0 0
        %885 = vmatpush.bf16.msra.mxu0 0
        %886 = vmatpush.bf16.msra.mxu0 0
        %887 = vmatpush.bf16.msra.mxu0 %v878
        %888 = vmatmul.bf16.gmra.mxu0 %v618
        %v889 = vpop.f32.mrf.mxu0
        %v890 = vadd.f32 0.0, %v889
        %v891 = vpop.f32.mrf.mxu0
        %892 = vdwg.mxu0
        %v893 = vmul.f32 %v890, 0.2
        %v894 = vsub.f32 %v875, %v893
        %v895 = vadd.f32 %v636, %v809
        %v896 = vadd.f32 %v895, %v893
        %v897 = vpack.c.bf16 %v896, %v896
        %v902 = vunpack.c.l.b16 %v482
        %v903 = vunpack.c.l.b16 %v483
        %v904 = vunpack.c.l.b16 %v484
        %v905 = vunpack.c.l.b16 %v485
        %v906 = vpack.c.b16 %v903, %v902
        %v907 = vpack.c.b16 %v905, %v904
        %910 = vrot.lane.b32.xlu0 %v813, 32
        %v911 = vpop.permute.xlu0 %910
        %v914 = vsel %vm501, %v897, 0
        %916 = vmatpush.bf16.msra.mxu0 0
        %917 = vmatpush.bf16.msra.mxu0 0
        %918 = vmatpush.bf16.msra.mxu0 0
        %919 = vmatpush.bf16.msra.mxu0 0
        %920 = vmatpush.bf16.msra.mxu0 0
        %921 = vmatpush.bf16.msra.mxu0 0
        %922 = vmatpush.bf16.msra.mxu0 %v907
        %923 = vmatpush.bf16.msra.mxu0 %v906
        %924 = vmatmul.bf16.gmra.mxu0 %v914
        %v925 = vpop.f32.mrf.mxu0
        %v926 = vadd.f32 %v911, %v925
        %v927 = vpop.f32.mrf.mxu0
        %928 = vdwg.mxu0
        %v929 = vld [vmem:[#allocation3] sm:$0xff]
        %v930 = vadd.f32 %v929, %v926
        %931 = vst.msk [vmem:[#allocation2] sm:$0xff] %vm501, %v894
        %vm932 = vcmask 31744
        %933 = vst.msk [vmem:[#allocation3] sm:$0xff] %vm932, %v930
        %p934 = scmp.eq.s32.totalorder %s29, 1
        // Predicated region
        $region69: #{tpu_custom_call.1} parent=59 // pred_check
          %p935 = pneg %p934
        $region70: #{tpu_custom_call.1} parent=59 // pred_check_branch
          %937 = sbr.rel (%p935) target = $region72
        $region71: #{tpu_custom_call.1} parent=59 // pred_region
          %v938 = vsel %vm501, %v894, 0.0
          %939 = vadd.xlane.f32.xlu0 %v938
          %v940 = vpop.xlane.xlu0 %939
          %v941 = vrcp.pop 32.0
          %v942 = vmul.f32 32.0, %v941
          %v943 = vsub.f32 1.0, %v942
          %v944 = vmul.f32 %v941, %v943
          %v945 = vadd.f32 %v941, %v944
          %vm946 = vweird.f32 %v941
          %v947 = vsel %vm946, %v941, %v945
          %v948 = vmul.f32 %v940, %v947
          %v949 = vsub.f32 %v894, %v948
          %v950 = vmul.f32 %v949, %v949
          %v951 = vsel %vm501, %v950, 0.0
          %952 = vadd.xlane.f32.xlu0 %v951
          %v953 = vpop.xlane.xlu0 %952
          %v954 = vmul.f32 %v953, %v947
          %v955 = vadd.f32 %v954, 1e-05
          %v956 = vrsqrt.pop %v955
          %v957 = vmul.f32 %v956, %v955
          %v958 = vmul.f32 %v957, %v956
          %v959 = vmul.f32 0.5, %v958
          %v960 = vsub.f32 1.5, %v959
          %v961 = vmul.f32 %v956, %v960
          %vm962 = vweird.f32 %v955
          %vm963 = vweird.f32 %v956
          %vm964 = vmor %vm962, %vm963
          %v965 = vsel %vm964, %v956, %v961
          %v966 = vmul.f32 %v949, %v965
          %v967 = vld [vmem:[%s6] sm:$0x1]
          %v969 = vperm.slane %v967, 0
          %v971 = vmul.f32 %v966, %v969
          %v972 = vld [vmem:[%s7] sm:$0x1]
          %v974 = vperm.slane %v972, 0
          %v976 = vadd.f32 %v971, %v974
          %v977 = vld [vmem:[%s8] sm:$0xf]
          %v978 = vld [vmem:[%s8 + $0x4] sm:$0xf]
          %v979 = vld [vmem:[%s8 + $0x8] sm:$0xf]
          %v980 = vld [vmem:[%s8 + $0xc] sm:$0xf]
          %v981 = vpack.c.bf16 %v976, %v976
          %v982 = vld [vmem:[%s9] sm:$0x1]
          %v984 = vperm.slane %v982, 0
          %v990 = vunpack.c.l.b16 %v977
          %v991 = vunpack.c.l.b16 %v978
          %v992 = vunpack.c.l.b16 %v979
          %v993 = vunpack.c.l.b16 %v980
          %v994 = vpack.c.b16 %v991, %v990
          %v995 = vpack.c.b16 %v993, %v992
          %v999 = vsel %vm501, %v981, 0
          %1001 = vmatpush.bf16.msra.mxu0 0
          %1002 = vmatpush.bf16.msra.mxu0 0
          %1003 = vmatpush.bf16.msra.mxu0 0
          %1004 = vmatpush.bf16.msra.mxu0 0
          %1005 = vmatpush.bf16.msra.mxu0 0
          %1006 = vmatpush.bf16.msra.mxu0 0
          %1007 = vmatpush.bf16.msra.mxu0 %v995
          %1008 = vmatpush.bf16.msra.mxu0 %v994
          %1009 = vmatmul.bf16.gmra.mxu0 %v999
          %v1010 = vpop.f32.mrf.mxu0
          %v1011 = vadd.f32 %v984, %v1010
          %v1012 = vpop.f32.mrf.mxu0
          %1013 = vdwg.mxu0
          %1014 = vst.msk [vmem:[%s439] sm:$0xff] %vm932, %v1011
          %s1015 = scalar_lea.vmem %s439, 8 [#allocation6]
          %1016 = vst.msk [vmem:[%s1015] sm:$0xff] %vm932, %v930
        $region72: #{tpu_custom_call.1} parent=59 // pred_fallthru
          _
        %s1017 = sand.u32 %s279, 1
        %s1018 = sand.u32 %s279, 1
        %s1019 = smul.addr %s1018, 16
        %s1020 = scalar_lea.vmem [#allocation6], %s1019
        // Predicated region
        $region73: #{tpu_custom_call.1} parent=59 // pred_check
          %p1021 = pneg %p289
        $region74: #{tpu_custom_call.1} parent=59 // pred_check_branch
          %1023 = sbr.rel (%p1021) target = $region76
        $region75: #{tpu_custom_call.1} parent=59 // pred_region
          %s1024 = smul.addr %s28, 8
          %s1025 = scalar_lea.vmem %s10, %s1024
          // Predicated region
          $region77: #{tpu_custom_call.1} parent=75 // pred_check
            _
          $region78: #{tpu_custom_call.1} parent=75 // pred_check_branch
            %1027 = sbr.rel (0) target = $region80
          $region79: #{tpu_custom_call.1} parent=75 // pred_region
            // Predicated region
            $region81: #{tpu_custom_call.1} parent=79 // pred_check
              _
            $region82: #{tpu_custom_call.1} parent=79 // pred_check_branch
              %1029 = sbr.rel (0) target = $region84
            $region83: #{tpu_custom_call.1} parent=79 // pred_region
              // Predicated region
              $region96: #{tpu_custom_call.1} parent=83 // pred_check
                _
              $region97: #{tpu_custom_call.1} parent=83 // pred_check_branch
                %1047 = sbr.rel (0) target = $region99
              $region98: #{tpu_custom_call.1} parent=83 // pred_region
                loop: start=0, step=1, limit=1
                $region100: #{tpu_custom_call.1} parent=98 // loop_pre_header
                  _
                $region101: #{tpu_custom_call.1} parent=98 // loop_header
                  %s1049 = sphi 0, %s1053
                  %p1050 = scmp.ge.s32.totalorder %s1049, 1
                  %s1054 = sphi %s1020, %s1020
                  %s1055 = sphi %s1025, %s1025
                $region102: #{tpu_custom_call.1} parent=98 // loop_header_branch
                  %1052 = sbr.rel (%p1050) target = $region106
                $region103: #{tpu_custom_call.1} parent=98 // loop_body
                  %v1056 = vld [vmem:[%s1054] sm:$0xff]
                  %1057 = vst [vmem:[%s1055] sm:$0xff] %v1056
                  %v1058 = vld [vmem:[%s1054 + $0x8] sm:$0xff]
                  %1059 = vst [vmem:[%s1055 + $0x10] sm:$0xff] %v1058
                $region104: #{tpu_custom_call.1} parent=98 // loop_footer
                  %s1053 = sadd.s32 1, %s1049
                $region105: #{tpu_custom_call.1} parent=98 // loop_footer_branch
                  %1048 = sbr.rel target = $region101
                $region106: #{tpu_custom_call.1} parent=98 // loop_exit
                  _
              $region99: #{tpu_custom_call.1} parent=83 // pred_fallthru
                _
              // Predicated region
              $region107: #{tpu_custom_call.1} parent=83 // pred_check
                _
              $region108: #{tpu_custom_call.1} parent=83 // pred_check_branch
                %1061 = sbr.rel target = $region110
              $region109: #{tpu_custom_call.1} parent=83 // pred_region
                _
              $region110: #{tpu_custom_call.1} parent=83 // pred_fallthru
                _
            $region84: #{tpu_custom_call.1} parent=79 // pred_fallthru
              _
            // Predicated region
            $region85: #{tpu_custom_call.1} parent=79 // pred_check
              _
            $region86: #{tpu_custom_call.1} parent=79 // pred_check_branch
              %1031 = sbr.rel target = $region88
            $region87: #{tpu_custom_call.1} parent=79 // pred_region
              %s1033 = ssub.s32 256, 1
              loop: start=0, step=1, limit=1
              $region89: #{tpu_custom_call.1} parent=87 // loop_pre_header
                _
              $region90: #{tpu_custom_call.1} parent=87 // loop_header
                %s1035 = sphi 0, %s1039
                %p1036 = scmp.ge.s32.totalorder %s1035, 1
                %s1040 = sphi %s1020, %s1020
                %s1041 = sphi %s1025, %s1025
              $region91: #{tpu_custom_call.1} parent=87 // loop_header_branch
                %1038 = sbr.rel (%p1036) target = $region95
              $region92: #{tpu_custom_call.1} parent=87 // loop_body
                %v1042 = vld [vmem:[%s1040] sm:%s1033]
                %1043 = vst [vmem:[%s1041] sm:%s1033] %v1042
                %v1044 = vld [vmem:[%s1040 + $0x8] sm:%s1033]
                %1045 = vst [vmem:[%s1041 + $0x10] sm:%s1033] %v1044
              $region93: #{tpu_custom_call.1} parent=87 // loop_footer
                %s1039 = sadd.s32 1, %s1035
              $region94: #{tpu_custom_call.1} parent=87 // loop_footer_branch
                %1034 = sbr.rel target = $region90
              $region95: #{tpu_custom_call.1} parent=87 // loop_exit
                _
            $region88: #{tpu_custom_call.1} parent=79 // pred_fallthru
              _
          $region80: #{tpu_custom_call.1} parent=75 // pred_fallthru
            _
          %1062 = vnop
        $region76: #{tpu_custom_call.1} parent=59 // pred_fallthru
          _
      $region60: #{tpu_custom_call.1} parent=5 // pred_fallthru
        _
      %p1063 = scmp.le.s32.totalorder 2, %s19
      // Predicated region
      $region111: #{tpu_custom_call.1} parent=5 // pred_check
        %p1064 = pneg %p1063
      $region112: #{tpu_custom_call.1} parent=5 // pred_check_branch
        %1066 = sbr.rel (%p1064) target = $region114
      $region113: #{tpu_custom_call.1} parent=5 // pred_region
        %s1067 = ssub.s32 %s19, 2
        // Predicated region
        $region115: #{tpu_custom_call.1} parent=113 // pred_check
          %p1068 = pneg %p295
        $region116: #{tpu_custom_call.1} parent=113 // pred_check_branch
          %1070 = sbr.rel (%p1068) target = $region118
        $region117: #{tpu_custom_call.1} parent=113 // pred_region
          %s1071 = sand.u32 %s280, 1
          %s1072 = sand.u32 %s280, 1
          %s1073 = smul.addr %s1072, 16
          %s1074 = scalar_lea.vmem [#allocation6], %s1073
        $region118: #{tpu_custom_call.1} parent=113 // pred_fallthru
          _
      $region114: #{tpu_custom_call.1} parent=5 // pred_fallthru
        _
    $region6: #{tpu_custom_call.1} parent=1 // loop_footer
      %s23 = sadd.s32 1, %s19
    $region7: #{tpu_custom_call.1} parent=1 // loop_footer_branch
      %18 = sbr.rel target = $region3
    $region8: #{tpu_custom_call.1} parent=1 // loop_exit
      _
    %1075 = vsyncpa [#allocation5], 1
    %s1076 = scalar_lea.sflag [#allocation5], 1
    %1077 = vsyncpa %s1076, 1

</llo_original>
